<compile_context>
chip_gen: v7x
topology: tpu7x:2x2x1
jax: 0.10.0
libtpu: 0.0.40
codegen_flags: <defaults>
</compile_context>

<pallas_src>
import functools

import jax
import jax.numpy as jnp
from jax.experimental import pallas as pl
from jax.experimental.pallas import tpu as pltpu


_LOG_EPS = -23.025850929940457  # log(1e-10)


def _softplus(x):
    # torch.nn.functional.softplus(beta=1, threshold=20) without relying on a
    # log1p lowering: for very negative x use log(1+t) ~= t - t^2/2.
    xc = jnp.minimum(x, 20.0)
    t = jnp.exp(xc)
    sp = jnp.where(xc < -10.0, t - 0.5 * t * t, jnp.log(1.0 + t))
    return jnp.where(x > 20.0, x, sp)


def _march_kernel(dmm_ref, dens_ref, depths_ref, w_ref, depth_ref,
                  *, clamp_mode, volume_init):
    # Blocks: dens_ref / depths_ref / w_ref: (TR, S) with the samples axis on
    # the 128-wide lane axis; depth_ref: (TR, 1); dmm_ref: (2,) f32 in SMEM
    # holding [global min(depths), global max(depths)].
    S = dens_ref.shape[-1]

    depths = depths_ref[...].astype(jnp.float32)   # (TR, S)
    dens = dens_ref[...].astype(jnp.float32)       # (TR, S)

    lane = jax.lax.broadcasted_iota(jnp.int32, depths.shape, 1)

    # deltas[i] = depths[i+1] - depths[i]; last sample uses delta_inf = 1e10.
    # roll is circular along the (logical) sample axis; only position S-1
    # wraps and it is overridden by the where below.
    d_next = pltpu.roll(depths, shift=S - 1, axis=1)
    deltas = jnp.where(lane == S - 1, 1e10, d_next - depths)

    # TODO(synk): rendering_options['nerf_noise'] > 0 (torch.randn density
    # noise) is not implemented; noise is taken as 0 (deterministic default).
    if clamp_mode == 'softplus':
        sigma = _softplus(dens + volume_init)
    elif clamp_mode == 'relu':
        sigma = jnp.maximum(dens, 0.0)
    elif clamp_mode == 'x^2':
        sigma = dens * dens
    else:
        raise ValueError(f"unknown clamp_mode {clamp_mode!r}")

    neg = -deltas * sigma                   # = log(1 - alphas)
    alphas = 1.0 - jnp.exp(neg)             # (TR, S)

    # Exclusive cumprod of (1 - alphas + 1e-10) along samples as a log-space
    # Hillis-Steele scan: log2(S) masked lane rolls.  g reuses -deltas*sigma
    # clamped at log(1e-10) instead of a second EUP log pass; the difference
    # only affects weights below ~1e-8 (well inside tolerance).
    g = jnp.maximum(neg, _LOG_EPS)
    h = jnp.where(lane >= 1, pltpu.roll(g, shift=1, axis=1), 0.0)
    d = 1
    while d < S:                            # ceil(log2(S)) unrolled steps
        h = h + jnp.where(lane >= d, pltpu.roll(h, shift=d, axis=1), 0.0)
        d *= 2
    trans = jnp.exp(h)                      # prod_{j<i}(1 - a_j + 1e-10)

    w = alphas * trans                      # (TR, S) weights, native layout
    w_ref[...] = w

    w_sum = jnp.sum(w, axis=1, keepdims=True)              # (TR, 1)
    dep_acc = jnp.sum(w * depths, axis=1, keepdims=True)   # (TR, 1)

    # depth = sum(w*d)/sum(w); 0/0 -> inf (torch.nan_to_num), clamp to the
    # global [min(depths), max(depths)] scalars held in SMEM, then *2 - 1.
    safe = jnp.where(w_sum > 0.0, w_sum, 1.0)
    depth = jnp.where(w_sum > 0.0, dep_acc / safe, jnp.inf)
    depth = jnp.clip(depth, dmm_ref[0], dmm_ref[1])
    depth_ref[...] = depth * 2.0 - 1.0


def _accumulate_kernel(colors_ref, w_ref, rgb_ref, *, white_back):
    # Blocks: colors_ref: (TR, S, C) in its native layout (channels on lanes,
    # samples on sublanes); w_ref: (TR, S, 1); rgb_ref: (TR, C).
    w = w_ref[...].astype(jnp.float32)              # (TR, S, 1)
    colors = colors_ref[...].astype(jnp.float32)    # (TR, S, C)
    rgb = jnp.sum(colors * w, axis=1)               # (TR, C)
    if white_back:
        w_sum = jnp.sum(w, axis=1)                  # (TR, 1)
        rgb = rgb + 1.0 - w_sum
    rgb_ref[...] = rgb * 2.0 - 1.0


def _round_up(x, m):
    return ((x + m - 1) // m) * m


def _vmem_limit_bytes():
    # Generation-aware scoped-VMEM request (v7x has 64 MiB vs 128 MiB on
    # v5e/v6e).  Conservative default if the query is unavailable.
    cap = None
    try:
        info = pltpu.get_tpu_info()
        cap = int(getattr(info, "vmem_capacity_bytes", 0)) or None
    except Exception:
        cap = None
    if cap is None:
        return 32 * 1024 * 1024
    return min(max(cap // 2, 16 * 1024 * 1024), 64 * 1024 * 1024)


def _pick_ray_tile(n_rays, per_ray_bytes, budget_bytes, max_tile=1024):
    """Largest multiple-of-8 ray tile that divides n_rays, fits the VMEM
    budget, and still leaves >=2 grid steps (ideally >=8)."""
    cap = min(n_rays, max_tile, max(8, budget_bytes // max(per_ray_bytes, 1)))
    if n_rays >= 16:
        cap = min(cap, n_rays // 2)                       # >= 2 steps (v7x TCs)
    cap = min(cap, max(128, _round_up(-(-n_rays // 8), 8)))   # prefer >= 8 steps
    cap = max(8, (cap // 8) * 8)
    for t in range(cap, 7, -8):
        if n_rays % t == 0:
            return t
    return 8


def ray_marcher_forward(colors, densities, depths, rendering_options):
    """colors (B,R,S,C), densities (B,R,S,1), depths (B,R,S,1) ->
    (rgb_final (B,R,C), depth_final (B,R,1), weights (B,R,S,1)),
    matching RayMarcher.forward (nerf_noise > 0 path excluded)."""
    B, R, S, C = colors.shape
    clamp_mode = rendering_options['clamp_mode']
    volume_init = float(rendering_options.get('volume_init', -1))
    white_back = bool(rendering_options.get('white_back', False))
    if float(rendering_options.get('nerf_noise', 0)) > 0:
        # TODO(synk): nerf_noise > 0 (training-time density noise) unsupported.
        raise NotImplementedError("nerf_noise > 0 is not implemented")
    # TODO(synk): the torch module also decays self.noise_std each call; that
    # is training-schedule state and does not affect the forward outputs.

    # Global clamp bounds as two SMEM scalars (scalar prefetch, no VMEM DMA).
    # TODO(synk): fold this min/max reduction into the depth sampler upstream.
    dmm = jnp.stack([jnp.min(depths), jnp.max(depths)]).astype(jnp.float32)

    # Native layouts only: flatten (B, R) -> N rays.  Every reshape below is a
    # free contiguous view, so there are no extra HBM layout passes.  Input
    # dtypes pass through untouched and are upcast in-kernel.
    N = B * R
    Np = _round_up(N, 8)
    col = colors.reshape(N, S, C)
    dens = densities.reshape(N, S)
    dep = depths.reshape(N, S)
    if Np != N:
        # TODO(synk): ragged ray counts pay one pad pass; keep B*R % 8 == 0.
        p = Np - N
        col = jnp.pad(col, ((0, p), (0, 0), (0, 0)))
        dens = jnp.pad(dens, ((0, p), (0, 0)))
        dep = jnp.pad(dep, ((0, p), (0, 0)))

    vmem_limit = _vmem_limit_bytes()
    tile_budget = int(vmem_limit * 0.7)

    # Kernel 1 footprint: (2 inputs + weights output) double-buffered plus
    # ~a dozen (TR, S) f32 temporaries; samples padded to the 128-lane width.
    bytes_s = _round_up(S, 128) * 4
    per_ray1 = 20 * bytes_s
    tr1 = _pick_ray_tile(Np, per_ray1, tile_budget, max_tile=1024)

    # Kernel 2 footprint: colors block (C padded to 128 lanes) double-buffered
    # plus the product temporary, and the (TR, S, 1) weights block.
    cbytes = _round_up(S, 8) * _round_up(C, 128) * 4
    wbytes = _round_up(S, 8) * 128 * 4
    per_ray2 = 4 * cbytes + 2 * wbytes
    tr2 = _pick_ray_tile(Np, per_ray2, tile_budget, max_tile=512)

    # ---- Kernel 1: deltas / sigma / scan -> weights, clamped depth ---------
    kernel1 = functools.partial(
        _march_kernel, clamp_mode=clamp_mode, volume_init=volume_init)

    weights_flat, depth_flat = pl.pallas_call(
        kernel1,
        out_shape=(jax.ShapeDtypeStruct((Np, S), jnp.float32),
                   jax.ShapeDtypeStruct((Np, 1), jnp.float32)),
        grid_spec=pltpu.PrefetchScalarGridSpec(
            num_scalar_prefetch=1,
            grid=(Np // tr1,),
            in_specs=[
                pl.BlockSpec((tr1, S), lambda i, dmm: (i, 0)),
                pl.BlockSpec((tr1, S), lambda i, dmm: (i, 0)),
            ],
            out_specs=(
                pl.BlockSpec((tr1, S), lambda i, dmm: (i, 0)),
                pl.BlockSpec((tr1, 1), lambda i, dmm: (i, 0)),
            )),
        compiler_params=pltpu.CompilerParams(
            dimension_semantics=("parallel",),
            vmem_limit_bytes=vmem_limit),
    )(dmm, dens, dep)

    # ---- Kernel 2: rgb accumulation over native-layout colors --------------
    kernel2 = functools.partial(_accumulate_kernel, white_back=white_back)

    rgb_flat = pl.pallas_call(
        kernel2,
        out_shape=jax.ShapeDtypeStruct((Np, C), jnp.float32),
        grid=(Np // tr2,),
        in_specs=[
            pl.BlockSpec((tr2, S, C), lambda i: (i, 0, 0)),
            pl.BlockSpec((tr2, S, 1), lambda i: (i, 0, 0)),
        ],
        out_specs=pl.BlockSpec((tr2, C), lambda i: (i, 0)),
        compiler_params=pltpu.CompilerParams(
            dimension_semantics=("parallel",),
            vmem_limit_bytes=vmem_limit),
    )(col, weights_flat.reshape(Np, S, 1))

    # Free reshapes back to the PyTorch output conventions.
    rgb_final = rgb_flat[:N].reshape(B, R, C)
    depth_final = depth_flat[:N].reshape(B, R, 1)
    weights = weights_flat[:N].reshape(B, R, S, 1)
    return rgb_final, depth_final, weights


def _reference(colors, densities, depths, opts):
    # Pure-JAX port of the PyTorch RayMarcher.forward (noise path excluded).
    deltas = depths[:, :, 1:] - depths[:, :, :-1]
    delta_inf = 1e10 * jnp.ones_like(deltas[:, :, :1])
    deltas = jnp.concatenate([deltas, delta_inf], axis=-2)
    mode = opts['clamp_mode']
    if mode == 'softplus':
        sigma = jax.nn.softplus(densities + opts.get('volume_init', -1))
    elif mode == 'relu':
        sigma = jax.nn.relu(densities)
    else:
        sigma = densities ** 2
    alphas = 1.0 - jnp.exp(-deltas * sigma)
    alphas_shifted = jnp.concatenate(
        [jnp.ones_like(alphas[:, :, :1]), 1.0 - alphas + 1e-10], axis=-2)
    weights = alphas * jnp.cumprod(alphas_shifted, axis=-2)[:, :, :-1]
    rgb_final = jnp.sum(weights * colors, axis=-2)
    depth_final = jnp.sum(weights * depths, axis=-2) / jnp.sum(weights, axis=-2)
    depth_final = jnp.nan_to_num(depth_final, nan=jnp.inf)
    depth_final = jnp.clip(depth_final, jnp.min(depths), jnp.max(depths))
    if opts.get('white_back', False):
        rgb_final = rgb_final + 1.0 - jnp.sum(weights, axis=2)
    return rgb_final * 2.0 - 1.0, depth_final * 2.0 - 1.0, weights


if __name__ == "__main__":
    key = jax.random.PRNGKey(0)
    # Small but representative shapes: 2 images x 128 rays, 128 depth samples
    # per ray (lane-aligned sample count, close to EG3D's 2x48), 4 channels.
    B, R, S, C = 2, 128, 128, 4
    k1, k2, k3 = jax.random.split(key, 3)

    colors = jax.random.uniform(k1, (B, R, S, C), dtype=jnp.float32)
    densities = jax.random.normal(k2, (B, R, S, 1), dtype=jnp.float32)
    # monotonically increasing depths along the sample axis
    near = 2.0 + 0.1 * jax.random.uniform(k3, (B, R, 1, 1), dtype=jnp.float32)
    steps = jnp.linspace(0.0, 1.0, S, dtype=jnp.float32).reshape(1, 1, S, 1)
    depths = near + steps

    configs = [
        {'clamp_mode': 'softplus', 'nerf_noise': 0, 'volume_init': -1,
         'white_back': False},
        {'clamp_mode': 'relu', 'nerf_noise': 0, 'volume_init': -1,
         'white_back': True},
        {'clamp_mode': 'x^2', 'nerf_noise': 0, 'volume_init': -1,
         'white_back': False},
    ]

    for opts in configs:
        rgb_final, depth_final, weights = ray_marcher_forward(
            colors, densities, depths, opts)
        jax.block_until_ready((rgb_final, depth_final, weights))

        assert rgb_final.shape == (B, R, C)
        assert depth_final.shape == (B, R, 1)
        assert weights.shape == (B, R, S, 1)

        ref_rgb, ref_depth, ref_w = _reference(colors, densities, depths, opts)
        assert jnp.allclose(rgb_final, ref_rgb, atol=1e-4, rtol=1e-3), opts
        assert jnp.allclose(depth_final, ref_depth, atol=1e-4, rtol=1e-3), opts
        assert jnp.allclose(weights, ref_w, atol=1e-4, rtol=1e-3), opts

    print("KERNEL_OK")
</pallas_src>

<mosaic_0001>
module attributes {stable_mosaic.version = 11 : i64} {
  func.func @_march_kernel(%arg0: i32, %arg1: memref<2xf32, #tpu.memory_space<smem>>, %arg2: memref<128x128xf32, #tpu.memory_space<vmem>>, %arg3: memref<128x128xf32, #tpu.memory_space<vmem>>, %arg4: memref<128x128xf32, #tpu.memory_space<vmem>>, %arg5: memref<128x1xf32, #tpu.memory_space<vmem>>) attributes {dimension_semantics = [#tpu.dimension_semantics<parallel>], iteration_bounds = array<i64: 2>, scalar_prefetch = 1 : i64, scratch_operands = 0 : i64, tpu.core_type = #tpu.core_type<tc>, window_params = [{transform_indices = @transform_0, window_bounds = array<i64: 128, 128>}, {transform_indices = @transform_1, window_bounds = array<i64: 128, 128>}, {transform_indices = @transform_2, window_bounds = array<i64: 128, 128>}, {transform_indices = @transform_3, window_bounds = array<i64: 128, 1>}]} {
    %c0 = arith.constant 0 : index
    %c0_0 = arith.constant 0 : index
    %0 = vector.load %arg3[%c0, %c0_0] : memref<128x128xf32, #tpu.memory_space<vmem>>, vector<128x128xf32>
    %c0_1 = arith.constant 0 : index
    %c0_2 = arith.constant 0 : index
    %1 = vector.load %arg2[%c0_1, %c0_2] : memref<128x128xf32, #tpu.memory_space<vmem>>, vector<128x128xf32>
    %2 = tpu.iota {dimensions = array<i32: 1>} : vector<128x128xi32>
    %c127_i32 = arith.constant 127 : i32
    %3 = tpu.dynamic_rotate %0 by %c127_i32 dim 1 : vector<128x128xf32>, i32 -> vector<128x128xf32>
    %c127_i32_3 = arith.constant 127 : i32
    %4 = vector.broadcast %c127_i32_3 : i32 to vector<128x128xi32>
    %5 = arith.cmpi eq, %2, %4 : vector<128x128xi32>
    %6 = arith.subf %3, %0 : vector<128x128xf32>
    %cst = arith.constant 1.000000e+10 : f32
    %7 = vector.broadcast %cst : f32 to vector<128x128xf32>
    %8 = arith.select %5, %7, %6 : vector<128x128xi1>, vector<128x128xf32>
    %cst_4 = arith.constant -1.000000e+00 : f32
    %9 = vector.broadcast %cst_4 : f32 to vector<128x128xf32>
    %10 = arith.addf %1, %9 : vector<128x128xf32>
    %cst_5 = arith.constant 2.000000e+01 : f32
    %11 = vector.broadcast %cst_5 : f32 to vector<128x128xf32>
    %12 = arith.minimumf %10, %11 : vector<128x128xf32>
    %13 = math.exp %12 : vector<128x128xf32>
    %cst_6 = arith.constant -1.000000e+01 : f32
    %14 = vector.broadcast %cst_6 : f32 to vector<128x128xf32>
    %15 = arith.cmpf olt, %12, %14 : vector<128x128xf32>
    %cst_7 = arith.constant 5.000000e-01 : f32
    %16 = vector.broadcast %cst_7 : f32 to vector<128x128xf32>
    %17 = arith.mulf %16, %13 : vector<128x128xf32>
    %18 = arith.mulf %17, %13 : vector<128x128xf32>
    %19 = arith.subf %13, %18 : vector<128x128xf32>
    %cst_8 = arith.constant 1.000000e+00 : f32
    %20 = vector.broadcast %cst_8 : f32 to vector<128x128xf32>
    %21 = arith.addf %20, %13 : vector<128x128xf32>
    %22 = math.log %21 : vector<128x128xf32>
    %23 = arith.select %15, %19, %22 : vector<128x128xi1>, vector<128x128xf32>
    %cst_9 = arith.constant 2.000000e+01 : f32
    %24 = vector.broadcast %cst_9 : f32 to vector<128x128xf32>
    %25 = arith.cmpf ogt, %10, %24 : vector<128x128xf32>
    %26 = arith.select %25, %10, %23 : vector<128x128xi1>, vector<128x128xf32>
    %cst_10 = arith.constant 0.000000e+00 : f32
    %27 = vector.broadcast %cst_10 : f32 to vector<128x128xf32>
    %28 = arith.subf %27, %8 : vector<128x128xf32>
    %29 = arith.mulf %28, %26 : vector<128x128xf32>
    %30 = math.exp %29 : vector<128x128xf32>
    %cst_11 = arith.constant 1.000000e+00 : f32
    %31 = vector.broadcast %cst_11 : f32 to vector<128x128xf32>
    %32 = arith.subf %31, %30 : vector<128x128xf32>
    %cst_12 = arith.constant -23.0258503 : f32
    %33 = vector.broadcast %cst_12 : f32 to vector<128x128xf32>
    %34 = arith.maximumf %29, %33 : vector<128x128xf32>
    %c1_i32 = arith.constant 1 : i32
    %35 = vector.broadcast %c1_i32 : i32 to vector<128x128xi32>
    %36 = arith.cmpi sge, %2, %35 : vector<128x128xi32>
    %c1_i32_13 = arith.constant 1 : i32
    %37 = tpu.dynamic_rotate %34 by %c1_i32_13 dim 1 : vector<128x128xf32>, i32 -> vector<128x128xf32>
    %cst_14 = arith.constant 0.000000e+00 : f32
    %38 = vector.broadcast %cst_14 : f32 to vector<128x128xf32>
    %39 = arith.select %36, %37, %38 : vector<128x128xi1>, vector<128x128xf32>
    %c1_i32_15 = arith.constant 1 : i32
    %40 = vector.broadcast %c1_i32_15 : i32 to vector<128x128xi32>
    %41 = arith.cmpi sge, %2, %40 : vector<128x128xi32>
    %c1_i32_16 = arith.constant 1 : i32
    %42 = tpu.dynamic_rotate %39 by %c1_i32_16 dim 1 : vector<128x128xf32>, i32 -> vector<128x128xf32>
    %cst_17 = arith.constant 0.000000e+00 : f32
    %43 = vector.broadcast %cst_17 : f32 to vector<128x128xf32>
    %44 = arith.select %41, %42, %43 : vector<128x128xi1>, vector<128x128xf32>
    %45 = arith.addf %39, %44 : vector<128x128xf32>
    %c2_i32 = arith.constant 2 : i32
    %46 = vector.broadcast %c2_i32 : i32 to vector<128x128xi32>
    %47 = arith.cmpi sge, %2, %46 : vector<128x128xi32>
    %c2_i32_18 = arith.constant 2 : i32
    %48 = tpu.dynamic_rotate %45 by %c2_i32_18 dim 1 : vector<128x128xf32>, i32 -> vector<128x128xf32>
    %cst_19 = arith.constant 0.000000e+00 : f32
    %49 = vector.broadcast %cst_19 : f32 to vector<128x128xf32>
    %50 = arith.select %47, %48, %49 : vector<128x128xi1>, vector<128x128xf32>
    %51 = arith.addf %45, %50 : vector<128x128xf32>
    %c4_i32 = arith.constant 4 : i32
    %52 = vector.broadcast %c4_i32 : i32 to vector<128x128xi32>
    %53 = arith.cmpi sge, %2, %52 : vector<128x128xi32>
    %c4_i32_20 = arith.constant 4 : i32
    %54 = tpu.dynamic_rotate %51 by %c4_i32_20 dim 1 : vector<128x128xf32>, i32 -> vector<128x128xf32>
    %cst_21 = arith.constant 0.000000e+00 : f32
    %55 = vector.broadcast %cst_21 : f32 to vector<128x128xf32>
    %56 = arith.select %53, %54, %55 : vector<128x128xi1>, vector<128x128xf32>
    %57 = arith.addf %51, %56 : vector<128x128xf32>
    %c8_i32 = arith.constant 8 : i32
    %58 = vector.broadcast %c8_i32 : i32 to vector<128x128xi32>
    %59 = arith.cmpi sge, %2, %58 : vector<128x128xi32>
    %c8_i32_22 = arith.constant 8 : i32
    %60 = tpu.dynamic_rotate %57 by %c8_i32_22 dim 1 : vector<128x128xf32>, i32 -> vector<128x128xf32>
    %cst_23 = arith.constant 0.000000e+00 : f32
    %61 = vector.broadcast %cst_23 : f32 to vector<128x128xf32>
    %62 = arith.select %59, %60, %61 : vector<128x128xi1>, vector<128x128xf32>
    %63 = arith.addf %57, %62 : vector<128x128xf32>
    %c16_i32 = arith.constant 16 : i32
    %64 = vector.broadcast %c16_i32 : i32 to vector<128x128xi32>
    %65 = arith.cmpi sge, %2, %64 : vector<128x128xi32>
    %c16_i32_24 = arith.constant 16 : i32
    %66 = tpu.dynamic_rotate %63 by %c16_i32_24 dim 1 : vector<128x128xf32>, i32 -> vector<128x128xf32>
    %cst_25 = arith.constant 0.000000e+00 : f32
    %67 = vector.broadcast %cst_25 : f32 to vector<128x128xf32>
    %68 = arith.select %65, %66, %67 : vector<128x128xi1>, vector<128x128xf32>
    %69 = arith.addf %63, %68 : vector<128x128xf32>
    %c32_i32 = arith.constant 32 : i32
    %70 = vector.broadcast %c32_i32 : i32 to vector<128x128xi32>
    %71 = arith.cmpi sge, %2, %70 : vector<128x128xi32>
    %c32_i32_26 = arith.constant 32 : i32
    %72 = tpu.dynamic_rotate %69 by %c32_i32_26 dim 1 : vector<128x128xf32>, i32 -> vector<128x128xf32>
    %cst_27 = arith.constant 0.000000e+00 : f32
    %73 = vector.broadcast %cst_27 : f32 to vector<128x128xf32>
    %74 = arith.select %71, %72, %73 : vector<128x128xi1>, vector<128x128xf32>
    %75 = arith.addf %69, %74 : vector<128x128xf32>
    %c64_i32 = arith.constant 64 : i32
    %76 = vector.broadcast %c64_i32 : i32 to vector<128x128xi32>
    %77 = arith.cmpi sge, %2, %76 : vector<128x128xi32>
    %c64_i32_28 = arith.constant 64 : i32
    %78 = tpu.dynamic_rotate %75 by %c64_i32_28 dim 1 : vector<128x128xf32>, i32 -> vector<128x128xf32>
    %cst_29 = arith.constant 0.000000e+00 : f32
    %79 = vector.broadcast %cst_29 : f32 to vector<128x128xf32>
    %80 = arith.select %77, %78, %79 : vector<128x128xi1>, vector<128x128xf32>
    %81 = arith.addf %75, %80 : vector<128x128xf32>
    %82 = math.exp %81 : vector<128x128xf32>
    %83 = arith.mulf %32, %82 : vector<128x128xf32>
    %c0_30 = arith.constant 0 : index
    %c0_31 = arith.constant 0 : index
    %84 = vector.load %arg4[%c0_30, %c0_31] : memref<128x128xf32, #tpu.memory_space<vmem>>, vector<128x128xf32>
    tpu.vector_store %arg4[%c0_30, %c0_31], %83 {strides = array<i32>} : memref<128x128xf32, #tpu.memory_space<vmem>>, vector<128x128xf32>,
    %cst_32 = arith.constant dense<0.000000e+00> : vector<128xf32>
    %85 = vector.multi_reduction <add>, %83, %cst_32 [1] : vector<128x128xf32> to vector<128xf32>
    %86 = vector.shape_cast %85 : vector<128xf32> to vector<128x1xf32>
    %87 = arith.mulf %83, %0 : vector<128x128xf32>
    %cst_33 = arith.constant dense<0.000000e+00> : vector<128xf32>
    %88 = vector.multi_reduction <add>, %87, %cst_33 [1] : vector<128x128xf32> to vector<128xf32>
    %89 = vector.shape_cast %88 : vector<128xf32> to vector<128x1xf32>
    %cst_34 = arith.constant 0.000000e+00 : f32
    %90 = vector.broadcast %cst_34 : f32 to vector<128x1xf32>
    %91 = arith.cmpf ogt, %86, %90 : vector<128x1xf32>
    %cst_35 = arith.constant 1.000000e+00 : f32
    %92 = vector.broadcast %cst_35 : f32 to vector<128x1xf32>
    %93 = arith.select %91, %86, %92 : vector<128x1xi1>, vector<128x1xf32>
    %cst_36 = arith.constant 0.000000e+00 : f32
    %94 = vector.broadcast %cst_36 : f32 to vector<128x1xf32>
    %95 = arith.cmpf ogt, %86, %94 : vector<128x1xf32>
    %96 = arith.divf %89, %93 : vector<128x1xf32>
    %cst_37 = arith.constant 0x7F800000 : f32
    %97 = vector.broadcast %cst_37 : f32 to vector<128x1xf32>
    %98 = arith.select %95, %96, %97 : vector<128x1xi1>, vector<128x1xf32>
    %c0_38 = arith.constant 0 : index
    %99 = memref.load %arg1[%c0_38] : memref<2xf32, #tpu.memory_space<smem>>
    %c1 = arith.constant 1 : index
    %100 = memref.load %arg1[%c1] : memref<2xf32, #tpu.memory_space<smem>>
    %101 = vector.broadcast %99 : f32 to vector<128x1xf32>
    %102 = arith.maximumf %101, %98 : vector<128x1xf32>
    %103 = vector.broadcast %100 : f32 to vector<128x1xf32>
    %104 = arith.minimumf %103, %102 : vector<128x1xf32>
    %cst_39 = arith.constant 2.000000e+00 : f32
    %105 = vector.broadcast %cst_39 : f32 to vector<128x1xf32>
    %106 = arith.mulf %104, %105 : vector<128x1xf32>
    %cst_40 = arith.constant 1.000000e+00 : f32
    %107 = vector.broadcast %cst_40 : f32 to vector<128x1xf32>
    %108 = arith.subf %106, %107 : vector<128x1xf32>
    %c0_41 = arith.constant 0 : index
    %c0_42 = arith.constant 0 : index
    %109 = vector.load %arg5[%c0_41, %c0_42] : memref<128x1xf32, #tpu.memory_space<vmem>>, vector<128x1xf32>
    tpu.vector_store %arg5[%c0_41, %c0_42], %108 {strides = array<i32>} : memref<128x1xf32, #tpu.memory_space<vmem>>, vector<128x1xf32>,
    return
  }
  func.func @transform_0(%arg0: i32, %arg1: memref<2xf32, #tpu.memory_space<smem>>) -> (i32, i32) {
    %c0_i32 = arith.constant 0 : i32
    %c0_i32_0 = arith.constant 0 : i32
    return %arg0, %c0_i32 : i32, i32
  }
  func.func @transform_1(%arg0: i32, %arg1: memref<2xf32, #tpu.memory_space<smem>>) -> (i32, i32) {
    %c0_i32 = arith.constant 0 : i32
    %c0_i32_0 = arith.constant 0 : i32
    return %arg0, %c0_i32 : i32, i32
  }
  func.func @transform_2(%arg0: i32, %arg1: memref<2xf32, #tpu.memory_space<smem>>) -> (i32, i32) {
    %c0_i32 = arith.constant 0 : i32
    %c0_i32_0 = arith.constant 0 : i32
    return %arg0, %c0_i32 : i32, i32
  }
  func.func @transform_3(%arg0: i32, %arg1: memref<2xf32, #tpu.memory_space<smem>>) -> (i32, i32) {
    %c0_i32 = arith.constant 0 : i32
    %c0_i32_0 = arith.constant 0 : i32
    return %arg0, %c0_i32 : i32, i32
  }
}

</mosaic_0001>

<llo_original>
// kernel: tpu_custom_call.1
$region0: #{tpu_custom_call.1}
  #allocation0 [shape = 'u32[]', space=smem, size = 0x4, offset = 0x4, fixed_abs, tag = 'smem constant byte address 0x4 - core index']
  #allocation1 [shape = 'u32[144,128]{1,0:T(1,128)}', space=vmem, size = 0x12000, scoped, tag = 'internal scratch']
  #allocation2 [shape = 's32[1]{0}', space=sflag, size = 0x4, scoped, tag = 'scoped memory for tpu_custom_call.1']
  #allocation3 [shape = 'u8[512]{0}', space=smem, size = 0x200, scoped, tag = 'prefetched SMEM operand 0']
  %s0 = inlined_call_operand.hbm [shape: f32[2], index: 0, kind: input, shape index: {}]
  %s1 = inlined_call_operand.hbm [shape: f32[256,128], index: 1, kind: input, shape index: {}]
  %s2 = inlined_call_operand.hbm [shape: f32[256,128], index: 2, kind: input, shape index: {}]
  %s3 = inlined_call_operand.hbm [shape: f32[256,128], index: 3, kind: output, shape index: {0}]
  %s4 = inlined_call_operand.vmem [shape: f32[256,1], index: 4, kind: output, shape index: {1}]
  %5 = xla_tuple %s3, %s4
  %s6 = sld [smem:[#allocation0]]
  $region57: #{tpu_custom_call.1} parent=0
    _
  %s8 = ssub.s32 1, %s6
  %s9 = scalar_select 0, %s8, %s6
  %11 = dma.hbm_to_smem %s0, 16, [#allocation3], [#allocation2]
  %12 = dma.done [#allocation2], 16
  %13 = sfence
  $region1: #{tpu_custom_call.1} parent=0
    #allocation4 [shape = 'u8[131072]{0}', space=vmem, size = 0x20000, scoped, tag = 'input window, operand 1']
    #allocation5 [shape = 's32[2]{0}', space=sflag, size = 0x8, scoped, tag = 'scoped memory for tpu_custom_call.1']
    #allocation6 [shape = 's32[2]{0}', space=sflag, size = 0x8, scoped, tag = 'scoped memory for tpu_custom_call.1']
    #allocation7 [shape = 'u8[131072]{0}', space=vmem, size = 0x20000, scoped, tag = 'input window, operand 2']
    #allocation8 [shape = 's32[2]{0}', space=sflag, size = 0x8, scoped, tag = 'scoped memory for tpu_custom_call.1']
    #allocation9 [shape = 'u8[131072]{0}', space=vmem, size = 0x20000, scoped, tag = 'output window, operand 0']
    %14 = vsyncpa [#allocation5], 0
    %s15 = scalar_lea.sflag [#allocation5], 1
    %16 = vsyncpa %s15, 0
    %17 = vsyncpa [#allocation8], 0
    %s18 = scalar_lea.sflag [#allocation8], 1
    %19 = vsyncpa %s18, 0
    %20 = vsyncpa [#allocation6], 0
    %s21 = scalar_lea.sflag [#allocation6], 1
    %22 = vsyncpa %s21, 0
    loop: start=0, step=1, limit=4
    $region2: #{tpu_custom_call.1} parent=1 // loop_pre_header
      _
    $region3: #{tpu_custom_call.1} parent=1 // loop_header
      %s24 = sphi 0, %s28
      %p25 = scmp.ge.s32.totalorder %s24, 4
      %s34 = sphi 0, %s36
      %s37 = sphi 0, %s34
      %s38 = sphi 0, %s37
      %s54 = sphi 0, %s38
      %s60 = sphi 0, %s62
      %s63 = sphi 0, %s60
      %s64 = sphi 0, %s63
      %s80 = sphi 0, %s64
      %s86 = sphi 0, %s88
      %s89 = sphi 0, %s86
      %s90 = sphi 0, %s89
      %s106 = sphi 0, %s90
      %s112 = sphi 0, %s114
      %s115 = sphi 0, %s112
      %s116 = sphi 0, %s115
      %s132 = sphi 0, %s116
    $region4: #{tpu_custom_call.1} parent=1 // loop_header_branch
      %27 = sbr.rel (%p25) target = $region8
    $region5: #{tpu_custom_call.1} parent=1 // loop_body
      %s29 = ssub.s32 %s24, 1
      %s30 = ssub.s32 %s24, 2
      %s31 = sadd.s32 %s24, 1
      %s32 = ssub.s32 %s24, %s31
      %p33 = scmp.eq.s32.totalorder %s32, 0
      %s35 = sadd.s32 %s34, 1
      %s36 = scalar_select %p33, %s34, %s35
      %p39 = pneg %p33
      %p40 = scmp.eq.s32.totalorder %s24, 1
      %p41 = por %p39, %p40
      %p42 = scmp.ne.s32.totalorder %s34, %s37
      %p43 = scmp.eq.s32.totalorder %s24, 0
      %p44 = por %p42, %p43
      %p45 = scmp.ne.s32.totalorder %s34, %s37
      %p46 = scmp.eq.s32.totalorder %s29, 1
      %p47 = por %p45, %p46
      %p48 = scmp.ne.s32.totalorder %s37, %s38
      %p49 = scmp.eq.s32.totalorder %s29, 0
      %p50 = por %p48, %p49
      %p51 = scmp.ne.s32.totalorder %s37, %s38
      %p52 = scmp.eq.s32.totalorder %s30, 1
      %p53 = por %p51, %p52
      %p55 = scmp.ne.s32.totalorder %s38, %s54
      %p56 = scmp.eq.s32.totalorder %s30, 0
      %p57 = por %p55, %p56
      %s58 = ssub.s32 %s24, %s31
      %p59 = scmp.eq.s32.totalorder %s58, 0
      %s61 = sadd.s32 %s60, 1
      %s62 = scalar_select %p59, %s60, %s61
      %p65 = pneg %p59
      %p66 = scmp.eq.s32.totalorder %s24, 1
      %p67 = por %p65, %p66
      %p68 = scmp.ne.s32.totalorder %s60, %s63
      %p69 = scmp.eq.s32.totalorder %s24, 0
      %p70 = por %p68, %p69
      %p71 = scmp.ne.s32.totalorder %s60, %s63
      %p72 = scmp.eq.s32.totalorder %s29, 1
      %p73 = por %p71, %p72
      %p74 = scmp.ne.s32.totalorder %s63, %s64
      %p75 = scmp.eq.s32.totalorder %s29, 0
      %p76 = por %p74, %p75
      %p77 = scmp.ne.s32.totalorder %s63, %s64
      %p78 = scmp.eq.s32.totalorder %s30, 1
      %p79 = por %p77, %p78
      %p81 = scmp.ne.s32.totalorder %s64, %s80
      %p82 = scmp.eq.s32.totalorder %s30, 0
      %p83 = por %p81, %p82
      %s84 = ssub.s32 %s24, %s31
      %p85 = scmp.eq.s32.totalorder %s84, 0
      %s87 = sadd.s32 %s86, 1
      %s88 = scalar_select %p85, %s86, %s87
      %p91 = pneg %p85
      %p92 = scmp.eq.s32.totalorder %s24, 1
      %p93 = por %p91, %p92
      %p94 = scmp.ne.s32.totalorder %s86, %s89
      %p95 = scmp.eq.s32.totalorder %s24, 0
      %p96 = por %p94, %p95
      %p97 = scmp.ne.s32.totalorder %s86, %s89
      %p98 = scmp.eq.s32.totalorder %s29, 1
      %p99 = por %p97, %p98
      %p100 = scmp.ne.s32.totalorder %s89, %s90
      %p101 = scmp.eq.s32.totalorder %s29, 0
      %p102 = por %p100, %p101
      %p103 = scmp.ne.s32.totalorder %s89, %s90
      %p104 = scmp.eq.s32.totalorder %s30, 1
      %p105 = por %p103, %p104
      %p107 = scmp.ne.s32.totalorder %s90, %s106
      %p108 = scmp.eq.s32.totalorder %s30, 0
      %p109 = por %p107, %p108
      %s110 = ssub.s32 %s24, %s31
      %p111 = scmp.eq.s32.totalorder %s110, 0
      %s113 = sadd.s32 %s112, 1
      %s114 = scalar_select %p111, %s112, %s113
      %p117 = pneg %p111
      %p118 = scmp.eq.s32.totalorder %s24, 1
      %p119 = por %p117, %p118
      %p120 = scmp.ne.s32.totalorder %s112, %s115
      %p121 = scmp.eq.s32.totalorder %s24, 0
      %p122 = por %p120, %p121
      %p123 = scmp.ne.s32.totalorder %s112, %s115
      %p124 = scmp.eq.s32.totalorder %s29, 1
      %p125 = por %p123, %p124
      %p126 = scmp.ne.s32.totalorder %s115, %s116
      %p127 = scmp.eq.s32.totalorder %s29, 0
      %p128 = por %p126, %p127
      %p129 = scmp.ne.s32.totalorder %s115, %s116
      %p130 = scmp.eq.s32.totalorder %s30, 1
      %p131 = por %p129, %p130
      %p133 = scmp.ne.s32.totalorder %s116, %s132
      %p134 = scmp.eq.s32.totalorder %s30, 0
      %p135 = por %p133, %p134
      %p136 = scmp.le.s32.totalorder 1, %s24
      %p137 = scmp.lt.s32.totalorder %s24, 3
      %p138 = pnand %p136, %p137
      %p139 = pneg %p138
      // Predicated region
      $region9: #{tpu_custom_call.1} parent=5 // pred_check
        _
      $region10: #{tpu_custom_call.1} parent=5 // pred_check_branch
        %141 = sbr.rel (%p138) target = $region12
      $region11: #{tpu_custom_call.1} parent=5 // pred_region
        %s142 = ssub.s32 %s24, 1
      $region12: #{tpu_custom_call.1} parent=5 // pred_fallthru
        _
      %p143 = scmp.lt.s32.totalorder %s24, 2
      // Predicated region
      $region13: #{tpu_custom_call.1} parent=5 // pred_check
        %p144 = pneg %p143
      $region14: #{tpu_custom_call.1} parent=5 // pred_check_branch
        %146 = sbr.rel (%p144) target = $region16
      $region15: #{tpu_custom_call.1} parent=5 // pred_region
        // Predicated region
        $region17: #{tpu_custom_call.1} parent=15 // pred_check
          %p147 = pneg %p44
        $region18: #{tpu_custom_call.1} parent=15 // pred_check_branch
          %149 = sbr.rel (%p147) target = $region20
        $region19: #{tpu_custom_call.1} parent=15 // pred_region
          %s150 = sand.u32 %s34, 1
          %s151 = scalar_lea.sflag [#allocation5], %s150
          %s152 = sand.u32 %s34, 1
          %s153 = smul.addr %s152, 128
          %s154 = scalar_lea.vmem [#allocation4], %s153
          %s155 = smul.u32 16, %s24
          %s157 = ssub.s32 2048, 2048
          %158 = vsyncadd %s151, %s157
          %s159 = smul.addr %s155, 128
          %s160 = scalar_lea.hbm %s1, %s159
          %s161 = sshll.u32 %s154, 4
          %s162 = int_to_ptr.vmem [resolvable:$true] %s161
          %167 = dma.hbm_to_vmem [thread:$0]  %s160, 2048, %s162, %s151, 128, 128, 8
        $region20: #{tpu_custom_call.1} parent=15 // pred_fallthru
          _
        // Predicated region
        $region21: #{tpu_custom_call.1} parent=15 // pred_check
          %p168 = pneg %p70
        $region22: #{tpu_custom_call.1} parent=15 // pred_check_branch
          %170 = sbr.rel (%p168) target = $region24
        $region23: #{tpu_custom_call.1} parent=15 // pred_region
          %s171 = sand.u32 %s60, 1
          %s172 = scalar_lea.sflag [#allocation8], %s171
          %s173 = sand.u32 %s60, 1
          %s174 = smul.addr %s173, 128
          %s175 = scalar_lea.vmem [#allocation7], %s174
          %s176 = smul.u32 16, %s24
          %s178 = ssub.s32 2048, 2048
          %179 = vsyncadd %s172, %s178
          %s180 = smul.addr %s176, 128
          %s181 = scalar_lea.hbm %s2, %s180
          %s182 = sshll.u32 %s175, 4
          %s183 = int_to_ptr.vmem [resolvable:$true] %s182
          %188 = dma.hbm_to_vmem [thread:$0]  %s181, 2048, %s183, %s172, 128, 128, 8
        $region24: #{tpu_custom_call.1} parent=15 // pred_fallthru
          _
      $region16: #{tpu_custom_call.1} parent=5 // pred_fallthru
        _
      %p189 = scmp.le.s32.totalorder 1, %s24
      %p190 = scmp.lt.s32.totalorder %s24, 3
      %p191 = pnand %p189, %p190
      %p192 = pneg %p191
      // Predicated region
      $region25: #{tpu_custom_call.1} parent=5 // pred_check
        _
      $region26: #{tpu_custom_call.1} parent=5 // pred_check_branch
        %194 = sbr.rel (%p191) target = $region28
      $region27: #{tpu_custom_call.1} parent=5 // pred_region
        %s195 = ssub.s32 %s24, 1
        %s196 = sand.u32 %s37, 1
        %s197 = scalar_lea.sflag [#allocation5], %s196
        %s198 = sand.u32 %s37, 1
        %s199 = smul.addr %s198, 128
        %s200 = scalar_lea.vmem [#allocation4], %s199
        // Predicated region
        $region29: #{tpu_custom_call.1} parent=27 // pred_check
          %p201 = pneg %p50
        $region30: #{tpu_custom_call.1} parent=27 // pred_check_branch
          %203 = sbr.rel (%p201) target = $region32
        $region31: #{tpu_custom_call.1} parent=27 // pred_region
          %204 = dma.done %s197, 2048
        $region32: #{tpu_custom_call.1} parent=27 // pred_fallthru
          _
        %s205 = sand.u32 %s63, 1
        %s206 = scalar_lea.sflag [#allocation8], %s205
        %s207 = sand.u32 %s63, 1
        %s208 = smul.addr %s207, 128
        %s209 = scalar_lea.vmem [#allocation7], %s208
        // Predicated region
        $region33: #{tpu_custom_call.1} parent=27 // pred_check
          %p210 = pneg %p76
        $region34: #{tpu_custom_call.1} parent=27 // pred_check_branch
          %212 = sbr.rel (%p210) target = $region36
        $region35: #{tpu_custom_call.1} parent=27 // pred_region
          %213 = dma.done %s206, 2048
        $region36: #{tpu_custom_call.1} parent=27 // pred_fallthru
          _
        %s214 = sand.u32 %s37, 1
        %s215 = scalar_lea.sflag [#allocation5], %s214
        %s216 = sand.u32 %s37, 1
        %s217 = smul.addr %s216, 128
        %s218 = scalar_lea.vmem [#allocation4], %s217
        %p219 = pneg %p50
        %p220 = pneg %p47
        %s221 = sand.u32 %s63, 1
        %s222 = scalar_lea.sflag [#allocation8], %s221
        %s223 = sand.u32 %s63, 1
        %s224 = smul.addr %s223, 128
        %s225 = scalar_lea.vmem [#allocation7], %s224
        %p226 = pneg %p76
        %p227 = pneg %p73
        %p228 = pneg %p102
        %p229 = pneg %p99
        %s230 = sand.u32 %s89, 1
        %s231 = scalar_lea.sflag [#allocation6], %s230
        %s232 = sand.u32 %s89, 1
        %s233 = smul.addr %s232, 128
        %s234 = scalar_lea.vmem [#allocation9], %s233
        %p235 = pneg %p128
        %p236 = pneg %p125
        %s237 = smul.u32 16, %s29
        %p238 = scmp.lt.s32.totalorder %s237, 31
        %s239 = scalar_select %p238, %s237, 31
        %s240 = smul.addr %s239, 8
        %s241 = scalar_lea.vmem %s4, %s240
        %s242 = smul.u32 16, %s29
        %s243 = smul.u32 16, %s29
        %s244 = smul.u32 16, %s29
        %s245 = smul.u32 16, %s29
        %p246 = scmp.lt.s32.totalorder %s245, 31
        %s247 = scalar_select %p246, %s245, 31
        %s248 = smul.addr %s247, 8
        %s249 = scalar_lea.vmem %s4, %s248
        %s250 = smul.u32 16, %s29
        %v251 = vld [vmem:[%s209] sm:$0xff]
        %v252 = vld [vmem:[%s209 + $0x8] sm:$0xff]
        %v253 = vld [vmem:[%s209 + $0x10] sm:$0xff]
        %v254 = vld [vmem:[%s209 + $0x18] sm:$0xff]
        %v255 = vld [vmem:[%s209 + $0x20] sm:$0xff]
        %v256 = vld [vmem:[%s209 + $0x28] sm:$0xff]
        %v257 = vld [vmem:[%s209 + $0x30] sm:$0xff]
        %v258 = vld [vmem:[%s209 + $0x38] sm:$0xff]
        %v259 = vld [vmem:[%s209 + $0x40] sm:$0xff]
        %v260 = vld [vmem:[%s209 + $0x48] sm:$0xff]
        %v261 = vld [vmem:[%s209 + $0x50] sm:$0xff]
        %v262 = vld [vmem:[%s209 + $0x58] sm:$0xff]
        %v263 = vld [vmem:[%s209 + $0x60] sm:$0xff]
        %v264 = vld [vmem:[%s209 + $0x68] sm:$0xff]
        %v265 = vld [vmem:[%s209 + $0x70] sm:$0xff]
        %v266 = vld [vmem:[%s209 + $0x78] sm:$0xff]
        %v267 = vld [vmem:[%s200] sm:$0xff]
        %v268 = vld [vmem:[%s200 + $0x8] sm:$0xff]
        %v269 = vld [vmem:[%s200 + $0x10] sm:$0xff]
        %v270 = vld [vmem:[%s200 + $0x18] sm:$0xff]
        %v271 = vld [vmem:[%s200 + $0x20] sm:$0xff]
        %v272 = vld [vmem:[%s200 + $0x28] sm:$0xff]
        %v273 = vld [vmem:[%s200 + $0x30] sm:$0xff]
        %v274 = vld [vmem:[%s200 + $0x38] sm:$0xff]
        %v275 = vld [vmem:[%s200 + $0x40] sm:$0xff]
        %v276 = vld [vmem:[%s200 + $0x48] sm:$0xff]
        %v277 = vld [vmem:[%s200 + $0x50] sm:$0xff]
        %v278 = vld [vmem:[%s200 + $0x58] sm:$0xff]
        %v279 = vld [vmem:[%s200 + $0x60] sm:$0xff]
        %v280 = vld [vmem:[%s200 + $0x68] sm:$0xff]
        %v281 = vld [vmem:[%s200 + $0x70] sm:$0xff]
        %v282 = vld [vmem:[%s200 + $0x78] sm:$0xff]
        %v283 = vlaneseq
        %v284 = vand.u32 %v283, 127
        %285 = vrot.lane.b32.xlu0 %v251, 127
        %v286 = vpop.permute.xlu0 %285
        %287 = vrot.lane.b32.xlu0 %v252, 127
        %v288 = vpop.permute.xlu0 %287
        %289 = vrot.lane.b32.xlu0 %v253, 127
        %v290 = vpop.permute.xlu0 %289
        %291 = vrot.lane.b32.xlu0 %v254, 127
        %v292 = vpop.permute.xlu0 %291
        %293 = vrot.lane.b32.xlu0 %v255, 127
        %v294 = vpop.permute.xlu0 %293
        %295 = vrot.lane.b32.xlu0 %v256, 127
        %v296 = vpop.permute.xlu0 %295
        %297 = vrot.lane.b32.xlu0 %v257, 127
        %v298 = vpop.permute.xlu0 %297
        %299 = vrot.lane.b32.xlu0 %v258, 127
        %v300 = vpop.permute.xlu0 %299
        %301 = vrot.lane.b32.xlu0 %v259, 127
        %v302 = vpop.permute.xlu0 %301
        %303 = vrot.lane.b32.xlu0 %v260, 127
        %v304 = vpop.permute.xlu0 %303
        %305 = vrot.lane.b32.xlu0 %v261, 127
        %v306 = vpop.permute.xlu0 %305
        %307 = vrot.lane.b32.xlu0 %v262, 127
        %v308 = vpop.permute.xlu0 %307
        %309 = vrot.lane.b32.xlu0 %v263, 127
        %v310 = vpop.permute.xlu0 %309
        %311 = vrot.lane.b32.xlu0 %v264, 127
        %v312 = vpop.permute.xlu0 %311
        %313 = vrot.lane.b32.xlu0 %v265, 127
        %v314 = vpop.permute.xlu0 %313
        %315 = vrot.lane.b32.xlu0 %v266, 127
        %v316 = vpop.permute.xlu0 %315
        %vm317 = vcmp.eq.s32.totalorder %v284, 127
        %v318 = vsub.f32 %v286, %v251
        %v319 = vsub.f32 %v288, %v252
        %v320 = vsub.f32 %v290, %v253
        %v321 = vsub.f32 %v292, %v254
        %v322 = vsub.f32 %v294, %v255
        %v323 = vsub.f32 %v296, %v256
        %v324 = vsub.f32 %v298, %v257
        %v325 = vsub.f32 %v300, %v258
        %v326 = vsub.f32 %v302, %v259
        %v327 = vsub.f32 %v304, %v260
        %v328 = vsub.f32 %v306, %v261
        %v329 = vsub.f32 %v308, %v262
        %v330 = vsub.f32 %v310, %v263
        %v331 = vsub.f32 %v312, %v264
        %v332 = vsub.f32 %v314, %v265
        %v333 = vsub.f32 %v316, %v266
        %v334 = vsel %vm317, 1e+10, %v318
        %v335 = vsel %vm317, 1e+10, %v319
        %v336 = vsel %vm317, 1e+10, %v320
        %v337 = vsel %vm317, 1e+10, %v321
        %v338 = vsel %vm317, 1e+10, %v322
        %v339 = vsel %vm317, 1e+10, %v323
        %v340 = vsel %vm317, 1e+10, %v324
        %v341 = vsel %vm317, 1e+10, %v325
        %v342 = vsel %vm317, 1e+10, %v326
        %v343 = vsel %vm317, 1e+10, %v327
        %v344 = vsel %vm317, 1e+10, %v328
        %v345 = vsel %vm317, 1e+10, %v329
        %v346 = vsel %vm317, 1e+10, %v330
        %v347 = vsel %vm317, 1e+10, %v331
        %v348 = vsel %vm317, 1e+10, %v332
        %v349 = vsel %vm317, 1e+10, %v333
        %v350 = vadd.f32 %v267, -1.0
        %v351 = vadd.f32 %v268, -1.0
        %v352 = vadd.f32 %v269, -1.0
        %v353 = vadd.f32 %v270, -1.0
        %v354 = vadd.f32 %v271, -1.0
        %v355 = vadd.f32 %v272, -1.0
        %v356 = vadd.f32 %v273, -1.0
        %v357 = vadd.f32 %v274, -1.0
        %v358 = vadd.f32 %v275, -1.0
        %v359 = vadd.f32 %v276, -1.0
        %v360 = vadd.f32 %v277, -1.0
        %v361 = vadd.f32 %v278, -1.0
        %v362 = vadd.f32 %v279, -1.0
        %v363 = vadd.f32 %v280, -1.0
        %v364 = vadd.f32 %v281, -1.0
        %v365 = vadd.f32 %v282, -1.0
        %v366 = vmin.f32 %v350, 20.0
        %v367 = vmin.f32 %v351, 20.0
        %v368 = vmin.f32 %v352, 20.0
        %v369 = vmin.f32 %v353, 20.0
        %v370 = vmin.f32 %v354, 20.0
        %v371 = vmin.f32 %v355, 20.0
        %v372 = vmin.f32 %v356, 20.0
        %v373 = vmin.f32 %v357, 20.0
        %v374 = vmin.f32 %v358, 20.0
        %v375 = vmin.f32 %v359, 20.0
        %v376 = vmin.f32 %v360, 20.0
        %v377 = vmin.f32 %v361, 20.0
        %v378 = vmin.f32 %v362, 20.0
        %v379 = vmin.f32 %v363, 20.0
        %v380 = vmin.f32 %v364, 20.0
        %v381 = vmin.f32 %v365, 20.0
        %v382 = vmul.f32 %v366, 1.442695
        %v383 = vpow.pop %v382
        %v384 = vmul.f32 %v367, 1.442695
        %v385 = vpow.pop %v384
        %v386 = vmul.f32 %v368, 1.442695
        %v387 = vpow.pop %v386
        %v388 = vmul.f32 %v369, 1.442695
        %v389 = vpow.pop %v388
        %v390 = vmul.f32 %v370, 1.442695
        %v391 = vpow.pop %v390
        %v392 = vmul.f32 %v371, 1.442695
        %v393 = vpow.pop %v392
        %v394 = vmul.f32 %v372, 1.442695
        %v395 = vpow.pop %v394
        %v396 = vmul.f32 %v373, 1.442695
        %v397 = vpow.pop %v396
        %v398 = vmul.f32 %v374, 1.442695
        %v399 = vpow.pop %v398
        %v400 = vmul.f32 %v375, 1.442695
        %v401 = vpow.pop %v400
        %v402 = vmul.f32 %v376, 1.442695
        %v403 = vpow.pop %v402
        %v404 = vmul.f32 %v377, 1.442695
        %v405 = vpow.pop %v404
        %v406 = vmul.f32 %v378, 1.442695
        %v407 = vpow.pop %v406
        %v408 = vmul.f32 %v379, 1.442695
        %v409 = vpow.pop %v408
        %v410 = vmul.f32 %v380, 1.442695
        %v411 = vpow.pop %v410
        %v412 = vmul.f32 %v381, 1.442695
        %v413 = vpow.pop %v412
        %vm414 = vcmp.lt.f32.partialorder %v366, -10.0
        %vm415 = vcmp.lt.f32.partialorder %v367, -10.0
        %vm416 = vcmp.lt.f32.partialorder %v368, -10.0
        %vm417 = vcmp.lt.f32.partialorder %v369, -10.0
        %vm418 = vcmp.lt.f32.partialorder %v370, -10.0
        %vm419 = vcmp.lt.f32.partialorder %v371, -10.0
        %vm420 = vcmp.lt.f32.partialorder %v372, -10.0
        %vm421 = vcmp.lt.f32.partialorder %v373, -10.0
        %vm422 = vcmp.lt.f32.partialorder %v374, -10.0
        %vm423 = vcmp.lt.f32.partialorder %v375, -10.0
        %vm424 = vcmp.lt.f32.partialorder %v376, -10.0
        %vm425 = vcmp.lt.f32.partialorder %v377, -10.0
        %vm426 = vcmp.lt.f32.partialorder %v378, -10.0
        %vm427 = vcmp.lt.f32.partialorder %v379, -10.0
        %vm428 = vcmp.lt.f32.partialorder %v380, -10.0
        %vm429 = vcmp.lt.f32.partialorder %v381, -10.0
        %v430 = vmul.f32 %v383, 0.5
        %v431 = vmul.f32 %v385, 0.5
        %v432 = vmul.f32 %v387, 0.5
        %v433 = vmul.f32 %v389, 0.5
        %v434 = vmul.f32 %v391, 0.5
        %v435 = vmul.f32 %v393, 0.5
        %v436 = vmul.f32 %v395, 0.5
        %v437 = vmul.f32 %v397, 0.5
        %v438 = vmul.f32 %v399, 0.5
        %v439 = vmul.f32 %v401, 0.5
        %v440 = vmul.f32 %v403, 0.5
        %v441 = vmul.f32 %v405, 0.5
        %v442 = vmul.f32 %v407, 0.5
        %v443 = vmul.f32 %v409, 0.5
        %v444 = vmul.f32 %v411, 0.5
        %v445 = vmul.f32 %v413, 0.5
        %v446 = vmul.f32 %v430, %v383
        %v447 = vmul.f32 %v431, %v385
        %v448 = vmul.f32 %v432, %v387
        %v449 = vmul.f32 %v433, %v389
        %v450 = vmul.f32 %v434, %v391
        %v451 = vmul.f32 %v435, %v393
        %v452 = vmul.f32 %v436, %v395
        %v453 = vmul.f32 %v437, %v397
        %v454 = vmul.f32 %v438, %v399
        %v455 = vmul.f32 %v439, %v401
        %v456 = vmul.f32 %v440, %v403
        %v457 = vmul.f32 %v441, %v405
        %v458 = vmul.f32 %v442, %v407
        %v459 = vmul.f32 %v443, %v409
        %v460 = vmul.f32 %v444, %v411
        %v461 = vmul.f32 %v445, %v413
        %v462 = vsub.f32 %v383, %v446
        %v463 = vsub.f32 %v385, %v447
        %v464 = vsub.f32 %v387, %v448
        %v465 = vsub.f32 %v389, %v449
        %v466 = vsub.f32 %v391, %v450
        %v467 = vsub.f32 %v393, %v451
        %v468 = vsub.f32 %v395, %v452
        %v469 = vsub.f32 %v397, %v453
        %v470 = vsub.f32 %v399, %v454
        %v471 = vsub.f32 %v401, %v455
        %v472 = vsub.f32 %v403, %v456
        %v473 = vsub.f32 %v405, %v457
        %v474 = vsub.f32 %v407, %v458
        %v475 = vsub.f32 %v409, %v459
        %v476 = vsub.f32 %v411, %v460
        %v477 = vsub.f32 %v413, %v461
        %v478 = vadd.f32 %v383, 1.0
        %v479 = vadd.f32 %v385, 1.0
        %v480 = vadd.f32 %v387, 1.0
        %v481 = vadd.f32 %v389, 1.0
        %v482 = vadd.f32 %v391, 1.0
        %v483 = vadd.f32 %v393, 1.0
        %v484 = vadd.f32 %v395, 1.0
        %v485 = vadd.f32 %v397, 1.0
        %v486 = vadd.f32 %v399, 1.0
        %v487 = vadd.f32 %v401, 1.0
        %v488 = vadd.f32 %v403, 1.0
        %v489 = vadd.f32 %v405, 1.0
        %v490 = vadd.f32 %v407, 1.0
        %v491 = vadd.f32 %v409, 1.0
        %v492 = vadd.f32 %v411, 1.0
        %v493 = vadd.f32 %v413, 1.0
        %v494 = vlog2.pop %v478
        %v495 = vmul.f32 %v494, 0.6931472
        %v496 = vlog2.pop %v479
        %v497 = vmul.f32 %v496, 0.6931472
        %v498 = vlog2.pop %v480
        %v499 = vmul.f32 %v498, 0.6931472
        %v500 = vlog2.pop %v481
        %v501 = vmul.f32 %v500, 0.6931472
        %v502 = vlog2.pop %v482
        %v503 = vmul.f32 %v502, 0.6931472
        %v504 = vlog2.pop %v483
        %v505 = vmul.f32 %v504, 0.6931472
        %v506 = vlog2.pop %v484
        %v507 = vmul.f32 %v506, 0.6931472
        %v508 = vlog2.pop %v485
        %v509 = vmul.f32 %v508, 0.6931472
        %v510 = vlog2.pop %v486
        %v511 = vmul.f32 %v510, 0.6931472
        %v512 = vlog2.pop %v487
        %v513 = vmul.f32 %v512, 0.6931472
        %v514 = vlog2.pop %v488
        %v515 = vmul.f32 %v514, 0.6931472
        %v516 = vlog2.pop %v489
        %v517 = vmul.f32 %v516, 0.6931472
        %v518 = vlog2.pop %v490
        %v519 = vmul.f32 %v518, 0.6931472
        %v520 = vlog2.pop %v491
        %v521 = vmul.f32 %v520, 0.6931472
        %v522 = vlog2.pop %v492
        %v523 = vmul.f32 %v522, 0.6931472
        %v524 = vlog2.pop %v493
        %v525 = vmul.f32 %v524, 0.6931472
        %v526 = vsel %vm414, %v462, %v495
        %v527 = vsel %vm415, %v463, %v497
        %v528 = vsel %vm416, %v464, %v499
        %v529 = vsel %vm417, %v465, %v501
        %v530 = vsel %vm418, %v466, %v503
        %v531 = vsel %vm419, %v467, %v505
        %v532 = vsel %vm420, %v468, %v507
        %v533 = vsel %vm421, %v469, %v509
        %v534 = vsel %vm422, %v470, %v511
        %v535 = vsel %vm423, %v471, %v513
        %v536 = vsel %vm424, %v472, %v515
        %v537 = vsel %vm425, %v473, %v517
        %v538 = vsel %vm426, %v474, %v519
        %v539 = vsel %vm427, %v475, %v521
        %v540 = vsel %vm428, %v476, %v523
        %v541 = vsel %vm429, %v477, %v525
        %vm542 = vcmp.gt.f32.partialorder %v350, 20.0
        %vm543 = vcmp.gt.f32.partialorder %v351, 20.0
        %vm544 = vcmp.gt.f32.partialorder %v352, 20.0
        %vm545 = vcmp.gt.f32.partialorder %v353, 20.0
        %vm546 = vcmp.gt.f32.partialorder %v354, 20.0
        %vm547 = vcmp.gt.f32.partialorder %v355, 20.0
        %vm548 = vcmp.gt.f32.partialorder %v356, 20.0
        %vm549 = vcmp.gt.f32.partialorder %v357, 20.0
        %vm550 = vcmp.gt.f32.partialorder %v358, 20.0
        %vm551 = vcmp.gt.f32.partialorder %v359, 20.0
        %vm552 = vcmp.gt.f32.partialorder %v360, 20.0
        %vm553 = vcmp.gt.f32.partialorder %v361, 20.0
        %vm554 = vcmp.gt.f32.partialorder %v362, 20.0
        %vm555 = vcmp.gt.f32.partialorder %v363, 20.0
        %vm556 = vcmp.gt.f32.partialorder %v364, 20.0
        %vm557 = vcmp.gt.f32.partialorder %v365, 20.0
        %v558 = vsel %vm542, %v350, %v526
        %v559 = vsel %vm543, %v351, %v527
        %v560 = vsel %vm544, %v352, %v528
        %v561 = vsel %vm545, %v353, %v529
        %v562 = vsel %vm546, %v354, %v530
        %v563 = vsel %vm547, %v355, %v531
        %v564 = vsel %vm548, %v356, %v532
        %v565 = vsel %vm549, %v357, %v533
        %v566 = vsel %vm550, %v358, %v534
        %v567 = vsel %vm551, %v359, %v535
        %v568 = vsel %vm552, %v360, %v536
        %v569 = vsel %vm553, %v361, %v537
        %v570 = vsel %vm554, %v362, %v538
        %v571 = vsel %vm555, %v363, %v539
        %v572 = vsel %vm556, %v364, %v540
        %v573 = vsel %vm557, %v365, %v541
        %v574 = vsub.f32 0.0, %v334
        %v575 = vsub.f32 0.0, %v335
        %v576 = vsub.f32 0.0, %v336
        %v577 = vsub.f32 0.0, %v337
        %v578 = vsub.f32 0.0, %v338
        %v579 = vsub.f32 0.0, %v339
        %v580 = vsub.f32 0.0, %v340
        %v581 = vsub.f32 0.0, %v341
        %v582 = vsub.f32 0.0, %v342
        %v583 = vsub.f32 0.0, %v343
        %v584 = vsub.f32 0.0, %v344
        %v585 = vsub.f32 0.0, %v345
        %v586 = vsub.f32 0.0, %v346
        %v587 = vsub.f32 0.0, %v347
        %v588 = vsub.f32 0.0, %v348
        %v589 = vsub.f32 0.0, %v349
        %v590 = vmul.f32 %v574, %v558
        %v591 = vmul.f32 %v575, %v559
        %v592 = vmul.f32 %v576, %v560
        %v593 = vmul.f32 %v577, %v561
        %v594 = vmul.f32 %v578, %v562
        %v595 = vmul.f32 %v579, %v563
        %v596 = vmul.f32 %v580, %v564
        %v597 = vmul.f32 %v581, %v565
        %v598 = vmul.f32 %v582, %v566
        %v599 = vmul.f32 %v583, %v567
        %v600 = vmul.f32 %v584, %v568
        %v601 = vmul.f32 %v585, %v569
        %v602 = vmul.f32 %v586, %v570
        %v603 = vmul.f32 %v587, %v571
        %v604 = vmul.f32 %v588, %v572
        %v605 = vmul.f32 %v589, %v573
        %v606 = vmul.f32 %v590, 1.442695
        %v607 = vpow.pop %v606
        %v608 = vmul.f32 %v591, 1.442695
        %v609 = vpow.pop %v608
        %v610 = vmul.f32 %v592, 1.442695
        %v611 = vpow.pop %v610
        %v612 = vmul.f32 %v593, 1.442695
        %v613 = vpow.pop %v612
        %v614 = vmul.f32 %v594, 1.442695
        %v615 = vpow.pop %v614
        %v616 = vmul.f32 %v595, 1.442695
        %v617 = vpow.pop %v616
        %v618 = vmul.f32 %v596, 1.442695
        %v619 = vpow.pop %v618
        %v620 = vmul.f32 %v597, 1.442695
        %v621 = vpow.pop %v620
        %v622 = vmul.f32 %v598, 1.442695
        %v623 = vpow.pop %v622
        %v624 = vmul.f32 %v599, 1.442695
        %v625 = vpow.pop %v624
        %v626 = vmul.f32 %v600, 1.442695
        %v627 = vpow.pop %v626
        %v628 = vmul.f32 %v601, 1.442695
        %v629 = vpow.pop %v628
        %v630 = vmul.f32 %v602, 1.442695
        %v631 = vpow.pop %v630
        %v632 = vmul.f32 %v603, 1.442695
        %v633 = vpow.pop %v632
        %v634 = vmul.f32 %v604, 1.442695
        %v635 = vpow.pop %v634
        %v636 = vmul.f32 %v605, 1.442695
        %v637 = vpow.pop %v636
        %v638 = vsub.f32 1.0, %v607
        %v639 = vsub.f32 1.0, %v609
        %v640 = vsub.f32 1.0, %v611
        %v641 = vsub.f32 1.0, %v613
        %v642 = vsub.f32 1.0, %v615
        %v643 = vsub.f32 1.0, %v617
        %v644 = vsub.f32 1.0, %v619
        %v645 = vsub.f32 1.0, %v621
        %v646 = vsub.f32 1.0, %v623
        %v647 = vsub.f32 1.0, %v625
        %v648 = vsub.f32 1.0, %v627
        %v649 = vsub.f32 1.0, %v629
        %v650 = vsub.f32 1.0, %v631
        %v651 = vsub.f32 1.0, %v633
        %v652 = vsub.f32 1.0, %v635
        %v653 = vsub.f32 1.0, %v637
        %v654 = vmax.f32 %v590, -23.02585
        %v655 = vmax.f32 %v591, -23.02585
        %v656 = vmax.f32 %v592, -23.02585
        %v657 = vmax.f32 %v593, -23.02585
        %v658 = vmax.f32 %v594, -23.02585
        %v659 = vmax.f32 %v595, -23.02585
        %v660 = vmax.f32 %v596, -23.02585
        %v661 = vmax.f32 %v597, -23.02585
        %v662 = vmax.f32 %v598, -23.02585
        %v663 = vmax.f32 %v599, -23.02585
        %v664 = vmax.f32 %v600, -23.02585
        %v665 = vmax.f32 %v601, -23.02585
        %v666 = vmax.f32 %v602, -23.02585
        %v667 = vmax.f32 %v603, -23.02585
        %v668 = vmax.f32 %v604, -23.02585
        %v669 = vmax.f32 %v605, -23.02585
        %vm670 = vcmp.ge.s32.totalorder %v284, 1
        %671 = vrot.lane.b32.xlu0 %v654, 1
        %v672 = vpop.permute.xlu0 %671
        %673 = vrot.lane.b32.xlu0 %v655, 1
        %v674 = vpop.permute.xlu0 %673
        %675 = vrot.lane.b32.xlu0 %v656, 1
        %v676 = vpop.permute.xlu0 %675
        %677 = vrot.lane.b32.xlu0 %v657, 1
        %v678 = vpop.permute.xlu0 %677
        %679 = vrot.lane.b32.xlu0 %v658, 1
        %v680 = vpop.permute.xlu0 %679
        %681 = vrot.lane.b32.xlu0 %v659, 1
        %v682 = vpop.permute.xlu0 %681
        %683 = vrot.lane.b32.xlu0 %v660, 1
        %v684 = vpop.permute.xlu0 %683
        %685 = vrot.lane.b32.xlu0 %v661, 1
        %v686 = vpop.permute.xlu0 %685
        %687 = vrot.lane.b32.xlu0 %v662, 1
        %v688 = vpop.permute.xlu0 %687
        %689 = vrot.lane.b32.xlu0 %v663, 1
        %v690 = vpop.permute.xlu0 %689
        %691 = vrot.lane.b32.xlu0 %v664, 1
        %v692 = vpop.permute.xlu0 %691
        %693 = vrot.lane.b32.xlu0 %v665, 1
        %v694 = vpop.permute.xlu0 %693
        %695 = vrot.lane.b32.xlu0 %v666, 1
        %v696 = vpop.permute.xlu0 %695
        %697 = vrot.lane.b32.xlu0 %v667, 1
        %v698 = vpop.permute.xlu0 %697
        %699 = vrot.lane.b32.xlu0 %v668, 1
        %v700 = vpop.permute.xlu0 %699
        %701 = vrot.lane.b32.xlu0 %v669, 1
        %v702 = vpop.permute.xlu0 %701
        %v703 = vsel %vm670, %v672, 0.0
        %v704 = vsel %vm670, %v674, 0.0
        %v705 = vsel %vm670, %v676, 0.0
        %v706 = vsel %vm670, %v678, 0.0
        %v707 = vsel %vm670, %v680, 0.0
        %v708 = vsel %vm670, %v682, 0.0
        %v709 = vsel %vm670, %v684, 0.0
        %v710 = vsel %vm670, %v686, 0.0
        %v711 = vsel %vm670, %v688, 0.0
        %v712 = vsel %vm670, %v690, 0.0
        %v713 = vsel %vm670, %v692, 0.0
        %v714 = vsel %vm670, %v694, 0.0
        %v715 = vsel %vm670, %v696, 0.0
        %v716 = vsel %vm670, %v698, 0.0
        %v717 = vsel %vm670, %v700, 0.0
        %v718 = vsel %vm670, %v702, 0.0
        %719 = vrot.lane.b32.xlu0 %v703, 1
        %v720 = vpop.permute.xlu0 %719
        %721 = vrot.lane.b32.xlu0 %v704, 1
        %v722 = vpop.permute.xlu0 %721
        %723 = vrot.lane.b32.xlu0 %v705, 1
        %v724 = vpop.permute.xlu0 %723
        %725 = vrot.lane.b32.xlu0 %v706, 1
        %v726 = vpop.permute.xlu0 %725
        %727 = vrot.lane.b32.xlu0 %v707, 1
        %v728 = vpop.permute.xlu0 %727
        %729 = vrot.lane.b32.xlu0 %v708, 1
        %v730 = vpop.permute.xlu0 %729
        %731 = vrot.lane.b32.xlu0 %v709, 1
        %v732 = vpop.permute.xlu0 %731
        %733 = vrot.lane.b32.xlu0 %v710, 1
        %v734 = vpop.permute.xlu0 %733
        %735 = vrot.lane.b32.xlu0 %v711, 1
        %v736 = vpop.permute.xlu0 %735
        %737 = vrot.lane.b32.xlu0 %v712, 1
        %v738 = vpop.permute.xlu0 %737
        %739 = vrot.lane.b32.xlu0 %v713, 1
        %v740 = vpop.permute.xlu0 %739
        %741 = vrot.lane.b32.xlu0 %v714, 1
        %v742 = vpop.permute.xlu0 %741
        %743 = vrot.lane.b32.xlu0 %v715, 1
        %v744 = vpop.permute.xlu0 %743
        %745 = vrot.lane.b32.xlu0 %v716, 1
        %v746 = vpop.permute.xlu0 %745
        %747 = vrot.lane.b32.xlu0 %v717, 1
        %v748 = vpop.permute.xlu0 %747
        %749 = vrot.lane.b32.xlu0 %v718, 1
        %v750 = vpop.permute.xlu0 %749
        %v751 = vsel %vm670, %v720, 0.0
        %v752 = vsel %vm670, %v722, 0.0
        %v753 = vsel %vm670, %v724, 0.0
        %v754 = vsel %vm670, %v726, 0.0
        %v755 = vsel %vm670, %v728, 0.0
        %v756 = vsel %vm670, %v730, 0.0
        %v757 = vsel %vm670, %v732, 0.0
        %v758 = vsel %vm670, %v734, 0.0
        %v759 = vsel %vm670, %v736, 0.0
        %v760 = vsel %vm670, %v738, 0.0
        %v761 = vsel %vm670, %v740, 0.0
        %v762 = vsel %vm670, %v742, 0.0
        %v763 = vsel %vm670, %v744, 0.0
        %v764 = vsel %vm670, %v746, 0.0
        %v765 = vsel %vm670, %v748, 0.0
        %v766 = vsel %vm670, %v750, 0.0
        %v767 = vadd.f32 %v703, %v751
        %v768 = vadd.f32 %v704, %v752
        %v769 = vadd.f32 %v705, %v753
        %v770 = vadd.f32 %v706, %v754
        %v771 = vadd.f32 %v707, %v755
        %v772 = vadd.f32 %v708, %v756
        %v773 = vadd.f32 %v709, %v757
        %v774 = vadd.f32 %v710, %v758
        %v775 = vadd.f32 %v711, %v759
        %v776 = vadd.f32 %v712, %v760
        %v777 = vadd.f32 %v713, %v761
        %v778 = vadd.f32 %v714, %v762
        %v779 = vadd.f32 %v715, %v763
        %v780 = vadd.f32 %v716, %v764
        %v781 = vadd.f32 %v717, %v765
        %v782 = vadd.f32 %v718, %v766
        %vm783 = vcmp.ge.s32.totalorder %v284, 2
        %784 = vrot.lane.b32.xlu0 %v767, 2
        %v785 = vpop.permute.xlu0 %784
        %786 = vrot.lane.b32.xlu0 %v768, 2
        %v787 = vpop.permute.xlu0 %786
        %788 = vrot.lane.b32.xlu0 %v769, 2
        %v789 = vpop.permute.xlu0 %788
        %790 = vrot.lane.b32.xlu0 %v770, 2
        %v791 = vpop.permute.xlu0 %790
        %792 = vrot.lane.b32.xlu0 %v771, 2
        %v793 = vpop.permute.xlu0 %792
        %794 = vrot.lane.b32.xlu0 %v772, 2
        %v795 = vpop.permute.xlu0 %794
        %796 = vrot.lane.b32.xlu0 %v773, 2
        %v797 = vpop.permute.xlu0 %796
        %798 = vrot.lane.b32.xlu0 %v774, 2
        %v799 = vpop.permute.xlu0 %798
        %800 = vrot.lane.b32.xlu0 %v775, 2
        %v801 = vpop.permute.xlu0 %800
        %802 = vrot.lane.b32.xlu0 %v776, 2
        %v803 = vpop.permute.xlu0 %802
        %804 = vrot.lane.b32.xlu0 %v777, 2
        %v805 = vpop.permute.xlu0 %804
        %806 = vrot.lane.b32.xlu0 %v778, 2
        %v807 = vpop.permute.xlu0 %806
        %808 = vrot.lane.b32.xlu0 %v779, 2
        %v809 = vpop.permute.xlu0 %808
        %810 = vrot.lane.b32.xlu0 %v780, 2
        %v811 = vpop.permute.xlu0 %810
        %812 = vrot.lane.b32.xlu0 %v781, 2
        %v813 = vpop.permute.xlu0 %812
        %814 = vrot.lane.b32.xlu0 %v782, 2
        %v815 = vpop.permute.xlu0 %814
        %v816 = vsel %vm783, %v785, 0.0
        %v817 = vsel %vm783, %v787, 0.0
        %v818 = vsel %vm783, %v789, 0.0
        %v819 = vsel %vm783, %v791, 0.0
        %v820 = vsel %vm783, %v793, 0.0
        %v821 = vsel %vm783, %v795, 0.0
        %v822 = vsel %vm783, %v797, 0.0
        %v823 = vsel %vm783, %v799, 0.0
        %v824 = vsel %vm783, %v801, 0.0
        %v825 = vsel %vm783, %v803, 0.0
        %v826 = vsel %vm783, %v805, 0.0
        %v827 = vsel %vm783, %v807, 0.0
        %v828 = vsel %vm783, %v809, 0.0
        %v829 = vsel %vm783, %v811, 0.0
        %v830 = vsel %vm783, %v813, 0.0
        %v831 = vsel %vm783, %v815, 0.0
        %v832 = vadd.f32 %v767, %v816
        %v833 = vadd.f32 %v768, %v817
        %v834 = vadd.f32 %v769, %v818
        %v835 = vadd.f32 %v770, %v819
        %v836 = vadd.f32 %v771, %v820
        %v837 = vadd.f32 %v772, %v821
        %v838 = vadd.f32 %v773, %v822
        %v839 = vadd.f32 %v774, %v823
        %v840 = vadd.f32 %v775, %v824
        %v841 = vadd.f32 %v776, %v825
        %v842 = vadd.f32 %v777, %v826
        %v843 = vadd.f32 %v778, %v827
        %v844 = vadd.f32 %v779, %v828
        %v845 = vadd.f32 %v780, %v829
        %v846 = vadd.f32 %v781, %v830
        %v847 = vadd.f32 %v782, %v831
        %vm848 = vcmp.ge.s32.totalorder %v284, 4
        %849 = vrot.lane.b32.xlu0 %v832, 4
        %v850 = vpop.permute.xlu0 %849
        %851 = vrot.lane.b32.xlu0 %v833, 4
        %v852 = vpop.permute.xlu0 %851
        %853 = vrot.lane.b32.xlu0 %v834, 4
        %v854 = vpop.permute.xlu0 %853
        %855 = vrot.lane.b32.xlu0 %v835, 4
        %v856 = vpop.permute.xlu0 %855
        %857 = vrot.lane.b32.xlu0 %v836, 4
        %v858 = vpop.permute.xlu0 %857
        %859 = vrot.lane.b32.xlu0 %v837, 4
        %v860 = vpop.permute.xlu0 %859
        %861 = vrot.lane.b32.xlu0 %v838, 4
        %v862 = vpop.permute.xlu0 %861
        %863 = vrot.lane.b32.xlu0 %v839, 4
        %v864 = vpop.permute.xlu0 %863
        %865 = vrot.lane.b32.xlu0 %v840, 4
        %v866 = vpop.permute.xlu0 %865
        %867 = vrot.lane.b32.xlu0 %v841, 4
        %v868 = vpop.permute.xlu0 %867
        %869 = vrot.lane.b32.xlu0 %v842, 4
        %v870 = vpop.permute.xlu0 %869
        %871 = vrot.lane.b32.xlu0 %v843, 4
        %v872 = vpop.permute.xlu0 %871
        %873 = vrot.lane.b32.xlu0 %v844, 4
        %v874 = vpop.permute.xlu0 %873
        %875 = vrot.lane.b32.xlu0 %v845, 4
        %v876 = vpop.permute.xlu0 %875
        %877 = vrot.lane.b32.xlu0 %v846, 4
        %v878 = vpop.permute.xlu0 %877
        %879 = vrot.lane.b32.xlu0 %v847, 4
        %v880 = vpop.permute.xlu0 %879
        %v881 = vsel %vm848, %v850, 0.0
        %v882 = vsel %vm848, %v852, 0.0
        %v883 = vsel %vm848, %v854, 0.0
        %v884 = vsel %vm848, %v856, 0.0
        %v885 = vsel %vm848, %v858, 0.0
        %v886 = vsel %vm848, %v860, 0.0
        %v887 = vsel %vm848, %v862, 0.0
        %v888 = vsel %vm848, %v864, 0.0
        %v889 = vsel %vm848, %v866, 0.0
        %v890 = vsel %vm848, %v868, 0.0
        %v891 = vsel %vm848, %v870, 0.0
        %v892 = vsel %vm848, %v872, 0.0
        %v893 = vsel %vm848, %v874, 0.0
        %v894 = vsel %vm848, %v876, 0.0
        %v895 = vsel %vm848, %v878, 0.0
        %v896 = vsel %vm848, %v880, 0.0
        %v897 = vadd.f32 %v832, %v881
        %v898 = vadd.f32 %v833, %v882
        %v899 = vadd.f32 %v834, %v883
        %v900 = vadd.f32 %v835, %v884
        %v901 = vadd.f32 %v836, %v885
        %v902 = vadd.f32 %v837, %v886
        %v903 = vadd.f32 %v838, %v887
        %v904 = vadd.f32 %v839, %v888
        %v905 = vadd.f32 %v840, %v889
        %v906 = vadd.f32 %v841, %v890
        %v907 = vadd.f32 %v842, %v891
        %v908 = vadd.f32 %v843, %v892
        %v909 = vadd.f32 %v844, %v893
        %v910 = vadd.f32 %v845, %v894
        %v911 = vadd.f32 %v846, %v895
        %v912 = vadd.f32 %v847, %v896
        %vm913 = vcmp.ge.s32.totalorder %v284, 8
        %914 = vrot.lane.b32.xlu0 %v897, 8
        %v915 = vpop.permute.xlu0 %914
        %916 = vrot.lane.b32.xlu0 %v898, 8
        %v917 = vpop.permute.xlu0 %916
        %918 = vrot.lane.b32.xlu0 %v899, 8
        %v919 = vpop.permute.xlu0 %918
        %920 = vrot.lane.b32.xlu0 %v900, 8
        %v921 = vpop.permute.xlu0 %920
        %922 = vrot.lane.b32.xlu0 %v901, 8
        %v923 = vpop.permute.xlu0 %922
        %924 = vrot.lane.b32.xlu0 %v902, 8
        %v925 = vpop.permute.xlu0 %924
        %926 = vrot.lane.b32.xlu0 %v903, 8
        %v927 = vpop.permute.xlu0 %926
        %928 = vrot.lane.b32.xlu0 %v904, 8
        %v929 = vpop.permute.xlu0 %928
        %930 = vrot.lane.b32.xlu0 %v905, 8
        %v931 = vpop.permute.xlu0 %930
        %932 = vrot.lane.b32.xlu0 %v906, 8
        %v933 = vpop.permute.xlu0 %932
        %934 = vrot.lane.b32.xlu0 %v907, 8
        %v935 = vpop.permute.xlu0 %934
        %936 = vrot.lane.b32.xlu0 %v908, 8
        %v937 = vpop.permute.xlu0 %936
        %938 = vrot.lane.b32.xlu0 %v909, 8
        %v939 = vpop.permute.xlu0 %938
        %940 = vrot.lane.b32.xlu0 %v910, 8
        %v941 = vpop.permute.xlu0 %940
        %942 = vrot.lane.b32.xlu0 %v911, 8
        %v943 = vpop.permute.xlu0 %942
        %944 = vrot.lane.b32.xlu0 %v912, 8
        %v945 = vpop.permute.xlu0 %944
        %v946 = vsel %vm913, %v915, 0.0
        %v947 = vsel %vm913, %v917, 0.0
        %v948 = vsel %vm913, %v919, 0.0
        %v949 = vsel %vm913, %v921, 0.0
        %v950 = vsel %vm913, %v923, 0.0
        %v951 = vsel %vm913, %v925, 0.0
        %v952 = vsel %vm913, %v927, 0.0
        %v953 = vsel %vm913, %v929, 0.0
        %v954 = vsel %vm913, %v931, 0.0
        %v955 = vsel %vm913, %v933, 0.0
        %v956 = vsel %vm913, %v935, 0.0
        %v957 = vsel %vm913, %v937, 0.0
        %v958 = vsel %vm913, %v939, 0.0
        %v959 = vsel %vm913, %v941, 0.0
        %v960 = vsel %vm913, %v943, 0.0
        %v961 = vsel %vm913, %v945, 0.0
        %v962 = vadd.f32 %v897, %v946
        %v963 = vadd.f32 %v898, %v947
        %v964 = vadd.f32 %v899, %v948
        %v965 = vadd.f32 %v900, %v949
        %v966 = vadd.f32 %v901, %v950
        %v967 = vadd.f32 %v902, %v951
        %v968 = vadd.f32 %v903, %v952
        %v969 = vadd.f32 %v904, %v953
        %v970 = vadd.f32 %v905, %v954
        %v971 = vadd.f32 %v906, %v955
        %v972 = vadd.f32 %v907, %v956
        %v973 = vadd.f32 %v908, %v957
        %v974 = vadd.f32 %v909, %v958
        %v975 = vadd.f32 %v910, %v959
        %v976 = vadd.f32 %v911, %v960
        %v977 = vadd.f32 %v912, %v961
        %vm978 = vcmp.ge.s32.totalorder %v284, 16
        %979 = vrot.lane.b32.xlu0 %v962, 16
        %v980 = vpop.permute.xlu0 %979
        %981 = vrot.lane.b32.xlu0 %v963, 16
        %v982 = vpop.permute.xlu0 %981
        %983 = vrot.lane.b32.xlu0 %v964, 16
        %v984 = vpop.permute.xlu0 %983
        %985 = vrot.lane.b32.xlu0 %v965, 16
        %v986 = vpop.permute.xlu0 %985
        %987 = vrot.lane.b32.xlu0 %v966, 16
        %v988 = vpop.permute.xlu0 %987
        %989 = vrot.lane.b32.xlu0 %v967, 16
        %v990 = vpop.permute.xlu0 %989
        %991 = vrot.lane.b32.xlu0 %v968, 16
        %v992 = vpop.permute.xlu0 %991
        %993 = vrot.lane.b32.xlu0 %v969, 16
        %v994 = vpop.permute.xlu0 %993
        %995 = vrot.lane.b32.xlu0 %v970, 16
        %v996 = vpop.permute.xlu0 %995
        %997 = vrot.lane.b32.xlu0 %v971, 16
        %v998 = vpop.permute.xlu0 %997
        %999 = vrot.lane.b32.xlu0 %v972, 16
        %v1000 = vpop.permute.xlu0 %999
        %1001 = vrot.lane.b32.xlu0 %v973, 16
        %v1002 = vpop.permute.xlu0 %1001
        %1003 = vrot.lane.b32.xlu0 %v974, 16
        %v1004 = vpop.permute.xlu0 %1003
        %1005 = vrot.lane.b32.xlu0 %v975, 16
        %v1006 = vpop.permute.xlu0 %1005
        %1007 = vrot.lane.b32.xlu0 %v976, 16
        %v1008 = vpop.permute.xlu0 %1007
        %1009 = vrot.lane.b32.xlu0 %v977, 16
        %v1010 = vpop.permute.xlu0 %1009
        %v1011 = vsel %vm978, %v980, 0.0
        %v1012 = vsel %vm978, %v982, 0.0
        %v1013 = vsel %vm978, %v984, 0.0
        %v1014 = vsel %vm978, %v986, 0.0
        %v1015 = vsel %vm978, %v988, 0.0
        %v1016 = vsel %vm978, %v990, 0.0
        %v1017 = vsel %vm978, %v992, 0.0
        %v1018 = vsel %vm978, %v994, 0.0
        %v1019 = vsel %vm978, %v996, 0.0
        %v1020 = vsel %vm978, %v998, 0.0
        %v1021 = vsel %vm978, %v1000, 0.0
        %v1022 = vsel %vm978, %v1002, 0.0
        %v1023 = vsel %vm978, %v1004, 0.0
        %v1024 = vsel %vm978, %v1006, 0.0
        %v1025 = vsel %vm978, %v1008, 0.0
        %v1026 = vsel %vm978, %v1010, 0.0
        %v1027 = vadd.f32 %v962, %v1011
        %v1028 = vadd.f32 %v963, %v1012
        %v1029 = vadd.f32 %v964, %v1013
        %v1030 = vadd.f32 %v965, %v1014
        %v1031 = vadd.f32 %v966, %v1015
        %v1032 = vadd.f32 %v967, %v1016
        %v1033 = vadd.f32 %v968, %v1017
        %v1034 = vadd.f32 %v969, %v1018
        %v1035 = vadd.f32 %v970, %v1019
        %v1036 = vadd.f32 %v971, %v1020
        %v1037 = vadd.f32 %v972, %v1021
        %v1038 = vadd.f32 %v973, %v1022
        %v1039 = vadd.f32 %v974, %v1023
        %v1040 = vadd.f32 %v975, %v1024
        %v1041 = vadd.f32 %v976, %v1025
        %v1042 = vadd.f32 %v977, %v1026
        %vm1043 = vcmp.ge.s32.totalorder %v284, 32
        %1044 = vrot.lane.b32.xlu0 %v1027, 32
        %v1045 = vpop.permute.xlu0 %1044
        %1046 = vrot.lane.b32.xlu0 %v1028, 32
        %v1047 = vpop.permute.xlu0 %1046
        %1048 = vrot.lane.b32.xlu0 %v1029, 32
        %v1049 = vpop.permute.xlu0 %1048
        %1050 = vrot.lane.b32.xlu0 %v1030, 32
        %v1051 = vpop.permute.xlu0 %1050
        %1052 = vrot.lane.b32.xlu0 %v1031, 32
        %v1053 = vpop.permute.xlu0 %1052
        %1054 = vrot.lane.b32.xlu0 %v1032, 32
        %v1055 = vpop.permute.xlu0 %1054
        %1056 = vrot.lane.b32.xlu0 %v1033, 32
        %v1057 = vpop.permute.xlu0 %1056
        %1058 = vrot.lane.b32.xlu0 %v1034, 32
        %v1059 = vpop.permute.xlu0 %1058
        %1060 = vrot.lane.b32.xlu0 %v1035, 32
        %v1061 = vpop.permute.xlu0 %1060
        %1062 = vrot.lane.b32.xlu0 %v1036, 32
        %v1063 = vpop.permute.xlu0 %1062
        %1064 = vrot.lane.b32.xlu0 %v1037, 32
        %v1065 = vpop.permute.xlu0 %1064
        %1066 = vrot.lane.b32.xlu0 %v1038, 32
        %v1067 = vpop.permute.xlu0 %1066
        %1068 = vrot.lane.b32.xlu0 %v1039, 32
        %v1069 = vpop.permute.xlu0 %1068
        %1070 = vrot.lane.b32.xlu0 %v1040, 32
        %v1071 = vpop.permute.xlu0 %1070
        %1072 = vrot.lane.b32.xlu0 %v1041, 32
        %v1073 = vpop.permute.xlu0 %1072
        %1074 = vrot.lane.b32.xlu0 %v1042, 32
        %v1075 = vpop.permute.xlu0 %1074
        %v1076 = vsel %vm1043, %v1045, 0.0
        %v1077 = vsel %vm1043, %v1047, 0.0
        %v1078 = vsel %vm1043, %v1049, 0.0
        %v1079 = vsel %vm1043, %v1051, 0.0
        %v1080 = vsel %vm1043, %v1053, 0.0
        %v1081 = vsel %vm1043, %v1055, 0.0
        %v1082 = vsel %vm1043, %v1057, 0.0
        %v1083 = vsel %vm1043, %v1059, 0.0
        %v1084 = vsel %vm1043, %v1061, 0.0
        %v1085 = vsel %vm1043, %v1063, 0.0
        %v1086 = vsel %vm1043, %v1065, 0.0
        %v1087 = vsel %vm1043, %v1067, 0.0
        %v1088 = vsel %vm1043, %v1069, 0.0
        %v1089 = vsel %vm1043, %v1071, 0.0
        %v1090 = vsel %vm1043, %v1073, 0.0
        %v1091 = vsel %vm1043, %v1075, 0.0
        %v1092 = vadd.f32 %v1027, %v1076
        %v1093 = vadd.f32 %v1028, %v1077
        %v1094 = vadd.f32 %v1029, %v1078
        %v1095 = vadd.f32 %v1030, %v1079
        %v1096 = vadd.f32 %v1031, %v1080
        %v1097 = vadd.f32 %v1032, %v1081
        %v1098 = vadd.f32 %v1033, %v1082
        %v1099 = vadd.f32 %v1034, %v1083
        %v1100 = vadd.f32 %v1035, %v1084
        %v1101 = vadd.f32 %v1036, %v1085
        %v1102 = vadd.f32 %v1037, %v1086
        %v1103 = vadd.f32 %v1038, %v1087
        %v1104 = vadd.f32 %v1039, %v1088
        %v1105 = vadd.f32 %v1040, %v1089
        %v1106 = vadd.f32 %v1041, %v1090
        %v1107 = vadd.f32 %v1042, %v1091
        %vm1108 = vcmp.ge.s32.totalorder %v284, 64
        %1109 = vrot.lane.b32.xlu0 %v1092, 64
        %v1110 = vpop.permute.xlu0 %1109
        %1111 = vrot.lane.b32.xlu0 %v1093, 64
        %v1112 = vpop.permute.xlu0 %1111
        %1113 = vrot.lane.b32.xlu0 %v1094, 64
        %v1114 = vpop.permute.xlu0 %1113
        %1115 = vrot.lane.b32.xlu0 %v1095, 64
        %v1116 = vpop.permute.xlu0 %1115
        %1117 = vrot.lane.b32.xlu0 %v1096, 64
        %v1118 = vpop.permute.xlu0 %1117
        %1119 = vrot.lane.b32.xlu0 %v1097, 64
        %v1120 = vpop.permute.xlu0 %1119
        %1121 = vrot.lane.b32.xlu0 %v1098, 64
        %v1122 = vpop.permute.xlu0 %1121
        %1123 = vrot.lane.b32.xlu0 %v1099, 64
        %v1124 = vpop.permute.xlu0 %1123
        %1125 = vrot.lane.b32.xlu0 %v1100, 64
        %v1126 = vpop.permute.xlu0 %1125
        %1127 = vrot.lane.b32.xlu0 %v1101, 64
        %v1128 = vpop.permute.xlu0 %1127
        %1129 = vrot.lane.b32.xlu0 %v1102, 64
        %v1130 = vpop.permute.xlu0 %1129
        %1131 = vrot.lane.b32.xlu0 %v1103, 64
        %v1132 = vpop.permute.xlu0 %1131
        %1133 = vrot.lane.b32.xlu0 %v1104, 64
        %v1134 = vpop.permute.xlu0 %1133
        %1135 = vrot.lane.b32.xlu0 %v1105, 64
        %v1136 = vpop.permute.xlu0 %1135
        %1137 = vrot.lane.b32.xlu0 %v1106, 64
        %v1138 = vpop.permute.xlu0 %1137
        %1139 = vrot.lane.b32.xlu0 %v1107, 64
        %v1140 = vpop.permute.xlu0 %1139
        %v1141 = vsel %vm1108, %v1110, 0.0
        %v1142 = vsel %vm1108, %v1112, 0.0
        %v1143 = vsel %vm1108, %v1114, 0.0
        %v1144 = vsel %vm1108, %v1116, 0.0
        %v1145 = vsel %vm1108, %v1118, 0.0
        %v1146 = vsel %vm1108, %v1120, 0.0
        %v1147 = vsel %vm1108, %v1122, 0.0
        %v1148 = vsel %vm1108, %v1124, 0.0
        %v1149 = vsel %vm1108, %v1126, 0.0
        %v1150 = vsel %vm1108, %v1128, 0.0
        %v1151 = vsel %vm1108, %v1130, 0.0
        %v1152 = vsel %vm1108, %v1132, 0.0
        %v1153 = vsel %vm1108, %v1134, 0.0
        %v1154 = vsel %vm1108, %v1136, 0.0
        %v1155 = vsel %vm1108, %v1138, 0.0
        %v1156 = vsel %vm1108, %v1140, 0.0
        %v1157 = vadd.f32 %v1092, %v1141
        %v1158 = vadd.f32 %v1093, %v1142
        %v1159 = vadd.f32 %v1094, %v1143
        %v1160 = vadd.f32 %v1095, %v1144
        %v1161 = vadd.f32 %v1096, %v1145
        %v1162 = vadd.f32 %v1097, %v1146
        %v1163 = vadd.f32 %v1098, %v1147
        %v1164 = vadd.f32 %v1099, %v1148
        %v1165 = vadd.f32 %v1100, %v1149
        %v1166 = vadd.f32 %v1101, %v1150
        %v1167 = vadd.f32 %v1102, %v1151
        %v1168 = vadd.f32 %v1103, %v1152
        %v1169 = vadd.f32 %v1104, %v1153
        %v1170 = vadd.f32 %v1105, %v1154
        %v1171 = vadd.f32 %v1106, %v1155
        %v1172 = vadd.f32 %v1107, %v1156
        %v1173 = vmul.f32 %v1157, 1.442695
        %v1174 = vpow.pop %v1173
        %v1175 = vmul.f32 %v1158, 1.442695
        %v1176 = vpow.pop %v1175
        %v1177 = vmul.f32 %v1159, 1.442695
        %v1178 = vpow.pop %v1177
        %v1179 = vmul.f32 %v1160, 1.442695
        %v1180 = vpow.pop %v1179
        %v1181 = vmul.f32 %v1161, 1.442695
        %v1182 = vpow.pop %v1181
        %v1183 = vmul.f32 %v1162, 1.442695
        %v1184 = vpow.pop %v1183
        %v1185 = vmul.f32 %v1163, 1.442695
        %v1186 = vpow.pop %v1185
        %v1187 = vmul.f32 %v1164, 1.442695
        %v1188 = vpow.pop %v1187
        %v1189 = vmul.f32 %v1165, 1.442695
        %v1190 = vpow.pop %v1189
        %v1191 = vmul.f32 %v1166, 1.442695
        %v1192 = vpow.pop %v1191
        %v1193 = vmul.f32 %v1167, 1.442695
        %v1194 = vpow.pop %v1193
        %v1195 = vmul.f32 %v1168, 1.442695
        %v1196 = vpow.pop %v1195
        %v1197 = vmul.f32 %v1169, 1.442695
        %v1198 = vpow.pop %v1197
        %v1199 = vmul.f32 %v1170, 1.442695
        %v1200 = vpow.pop %v1199
        %v1201 = vmul.f32 %v1171, 1.442695
        %v1202 = vpow.pop %v1201
        %v1203 = vmul.f32 %v1172, 1.442695
        %v1204 = vpow.pop %v1203
        %v1205 = vmul.f32 %v638, %v1174
        %v1206 = vmul.f32 %v639, %v1176
        %v1207 = vmul.f32 %v640, %v1178
        %v1208 = vmul.f32 %v641, %v1180
        %v1209 = vmul.f32 %v642, %v1182
        %v1210 = vmul.f32 %v643, %v1184
        %v1211 = vmul.f32 %v644, %v1186
        %v1212 = vmul.f32 %v645, %v1188
        %v1213 = vmul.f32 %v646, %v1190
        %v1214 = vmul.f32 %v647, %v1192
        %v1215 = vmul.f32 %v648, %v1194
        %v1216 = vmul.f32 %v649, %v1196
        %v1217 = vmul.f32 %v650, %v1198
        %v1218 = vmul.f32 %v651, %v1200
        %v1219 = vmul.f32 %v652, %v1202
        %v1220 = vmul.f32 %v653, %v1204
        %1221 = vst [vmem:[%s234] sm:$0xff] %v1205
        %1222 = vst [vmem:[%s234 + $0x8] sm:$0xff] %v1206
        %1223 = vst [vmem:[%s234 + $0x10] sm:$0xff] %v1207
        %1224 = vst [vmem:[%s234 + $0x18] sm:$0xff] %v1208
        %1225 = vst [vmem:[%s234 + $0x20] sm:$0xff] %v1209
        %1226 = vst [vmem:[%s234 + $0x28] sm:$0xff] %v1210
        %1227 = vst [vmem:[%s234 + $0x30] sm:$0xff] %v1211
        %1228 = vst [vmem:[%s234 + $0x38] sm:$0xff] %v1212
        %1229 = vst [vmem:[%s234 + $0x40] sm:$0xff] %v1213
        %1230 = vst [vmem:[%s234 + $0x48] sm:$0xff] %v1214
        %1231 = vst [vmem:[%s234 + $0x50] sm:$0xff] %v1215
        %1232 = vst [vmem:[%s234 + $0x58] sm:$0xff] %v1216
        %1233 = vst [vmem:[%s234 + $0x60] sm:$0xff] %v1217
        %1234 = vst [vmem:[%s234 + $0x68] sm:$0xff] %v1218
        %1235 = vst [vmem:[%s234 + $0x70] sm:$0xff] %v1219
        %1236 = vst [vmem:[%s234 + $0x78] sm:$0xff] %v1220
        %1237 = vadd.xlane.f32.xlu0 %v1205
        %v1238 = vpop.xlane.xlu0 %1237
        %1239 = vadd.xlane.f32.xlu0 %v1206
        %v1240 = vpop.xlane.xlu0 %1239
        %1241 = vadd.xlane.f32.xlu0 %v1207
        %v1242 = vpop.xlane.xlu0 %1241
        %1243 = vadd.xlane.f32.xlu0 %v1208
        %v1244 = vpop.xlane.xlu0 %1243
        %1245 = vadd.xlane.f32.xlu0 %v1209
        %v1246 = vpop.xlane.xlu0 %1245
        %1247 = vadd.xlane.f32.xlu0 %v1210
        %v1248 = vpop.xlane.xlu0 %1247
        %1249 = vadd.xlane.f32.xlu0 %v1211
        %v1250 = vpop.xlane.xlu0 %1249
        %1251 = vadd.xlane.f32.xlu0 %v1212
        %v1252 = vpop.xlane.xlu0 %1251
        %1253 = vadd.xlane.f32.xlu0 %v1213
        %v1254 = vpop.xlane.xlu0 %1253
        %1255 = vadd.xlane.f32.xlu0 %v1214
        %v1256 = vpop.xlane.xlu0 %1255
        %1257 = vadd.xlane.f32.xlu0 %v1215
        %v1258 = vpop.xlane.xlu0 %1257
        %1259 = vadd.xlane.f32.xlu0 %v1216
        %v1260 = vpop.xlane.xlu0 %1259
        %1261 = vadd.xlane.f32.xlu0 %v1217
        %v1262 = vpop.xlane.xlu0 %1261
        %1263 = vadd.xlane.f32.xlu0 %v1218
        %v1264 = vpop.xlane.xlu0 %1263
        %1265 = vadd.xlane.f32.xlu0 %v1219
        %v1266 = vpop.xlane.xlu0 %1265
        %1267 = vadd.xlane.f32.xlu0 %v1220
        %v1268 = vpop.xlane.xlu0 %1267
        %v1269 = vmul.f32 %v1205, %v251
        %v1270 = vmul.f32 %v1206, %v252
        %v1271 = vmul.f32 %v1207, %v253
        %v1272 = vmul.f32 %v1208, %v254
        %v1273 = vmul.f32 %v1209, %v255
        %v1274 = vmul.f32 %v1210, %v256
        %v1275 = vmul.f32 %v1211, %v257
        %v1276 = vmul.f32 %v1212, %v258
        %v1277 = vmul.f32 %v1213, %v259
        %v1278 = vmul.f32 %v1214, %v260
        %v1279 = vmul.f32 %v1215, %v261
        %v1280 = vmul.f32 %v1216, %v262
        %v1281 = vmul.f32 %v1217, %v263
        %v1282 = vmul.f32 %v1218, %v264
        %v1283 = vmul.f32 %v1219, %v265
        %v1284 = vmul.f32 %v1220, %v266
        %1285 = vadd.xlane.f32.xlu0 %v1269
        %v1286 = vpop.xlane.xlu0 %1285
        %1287 = vadd.xlane.f32.xlu0 %v1270
        %v1288 = vpop.xlane.xlu0 %1287
        %1289 = vadd.xlane.f32.xlu0 %v1271
        %v1290 = vpop.xlane.xlu0 %1289
        %1291 = vadd.xlane.f32.xlu0 %v1272
        %v1292 = vpop.xlane.xlu0 %1291
        %1293 = vadd.xlane.f32.xlu0 %v1273
        %v1294 = vpop.xlane.xlu0 %1293
        %1295 = vadd.xlane.f32.xlu0 %v1274
        %v1296 = vpop.xlane.xlu0 %1295
        %1297 = vadd.xlane.f32.xlu0 %v1275
        %v1298 = vpop.xlane.xlu0 %1297
        %1299 = vadd.xlane.f32.xlu0 %v1276
        %v1300 = vpop.xlane.xlu0 %1299
        %1301 = vadd.xlane.f32.xlu0 %v1277
        %v1302 = vpop.xlane.xlu0 %1301
        %1303 = vadd.xlane.f32.xlu0 %v1278
        %v1304 = vpop.xlane.xlu0 %1303
        %1305 = vadd.xlane.f32.xlu0 %v1279
        %v1306 = vpop.xlane.xlu0 %1305
        %1307 = vadd.xlane.f32.xlu0 %v1280
        %v1308 = vpop.xlane.xlu0 %1307
        %1309 = vadd.xlane.f32.xlu0 %v1281
        %v1310 = vpop.xlane.xlu0 %1309
        %1311 = vadd.xlane.f32.xlu0 %v1282
        %v1312 = vpop.xlane.xlu0 %1311
        %1313 = vadd.xlane.f32.xlu0 %v1283
        %v1314 = vpop.xlane.xlu0 %1313
        %1315 = vadd.xlane.f32.xlu0 %v1284
        %v1316 = vpop.xlane.xlu0 %1315
        %vm1317 = vcmp.gt.f32.partialorder %v1238, 0.0
        %vm1318 = vcmp.gt.f32.partialorder %v1240, 0.0
        %vm1319 = vcmp.gt.f32.partialorder %v1242, 0.0
        %vm1320 = vcmp.gt.f32.partialorder %v1244, 0.0
        %vm1321 = vcmp.gt.f32.partialorder %v1246, 0.0
        %vm1322 = vcmp.gt.f32.partialorder %v1248, 0.0
        %vm1323 = vcmp.gt.f32.partialorder %v1250, 0.0
        %vm1324 = vcmp.gt.f32.partialorder %v1252, 0.0
        %vm1325 = vcmp.gt.f32.partialorder %v1254, 0.0
        %vm1326 = vcmp.gt.f32.partialorder %v1256, 0.0
        %vm1327 = vcmp.gt.f32.partialorder %v1258, 0.0
        %vm1328 = vcmp.gt.f32.partialorder %v1260, 0.0
        %vm1329 = vcmp.gt.f32.partialorder %v1262, 0.0
        %vm1330 = vcmp.gt.f32.partialorder %v1264, 0.0
        %vm1331 = vcmp.gt.f32.partialorder %v1266, 0.0
        %vm1332 = vcmp.gt.f32.partialorder %v1268, 0.0
        %v1333 = vsel %vm1317, %v1238, 1.0
        %v1334 = vsel %vm1318, %v1240, 1.0
        %v1335 = vsel %vm1319, %v1242, 1.0
        %v1336 = vsel %vm1320, %v1244, 1.0
        %v1337 = vsel %vm1321, %v1246, 1.0
        %v1338 = vsel %vm1322, %v1248, 1.0
        %v1339 = vsel %vm1323, %v1250, 1.0
        %v1340 = vsel %vm1324, %v1252, 1.0
        %v1341 = vsel %vm1325, %v1254, 1.0
        %v1342 = vsel %vm1326, %v1256, 1.0
        %v1343 = vsel %vm1327, %v1258, 1.0
        %v1344 = vsel %vm1328, %v1260, 1.0
        %v1345 = vsel %vm1329, %v1262, 1.0
        %v1346 = vsel %vm1330, %v1264, 1.0
        %v1347 = vsel %vm1331, %v1266, 1.0
        %v1348 = vsel %vm1332, %v1268, 1.0
        %v1349 = vrcp.pop %v1333
        %v1350 = vmul.f32 %v1286, %v1349
        %v1351 = vrcp.pop %v1334
        %v1352 = vmul.f32 %v1288, %v1351
        %v1353 = vrcp.pop %v1335
        %v1354 = vmul.f32 %v1290, %v1353
        %v1355 = vrcp.pop %v1336
        %v1356 = vmul.f32 %v1292, %v1355
        %v1357 = vrcp.pop %v1337
        %v1358 = vmul.f32 %v1294, %v1357
        %v1359 = vrcp.pop %v1338
        %v1360 = vmul.f32 %v1296, %v1359
        %v1361 = vrcp.pop %v1339
        %v1362 = vmul.f32 %v1298, %v1361
        %v1363 = vrcp.pop %v1340
        %v1364 = vmul.f32 %v1300, %v1363
        %v1365 = vrcp.pop %v1341
        %v1366 = vmul.f32 %v1302, %v1365
        %v1367 = vrcp.pop %v1342
        %v1368 = vmul.f32 %v1304, %v1367
        %v1369 = vrcp.pop %v1343
        %v1370 = vmul.f32 %v1306, %v1369
        %v1371 = vrcp.pop %v1344
        %v1372 = vmul.f32 %v1308, %v1371
        %v1373 = vrcp.pop %v1345
        %v1374 = vmul.f32 %v1310, %v1373
        %v1375 = vrcp.pop %v1346
        %v1376 = vmul.f32 %v1312, %v1375
        %v1377 = vrcp.pop %v1347
        %v1378 = vmul.f32 %v1314, %v1377
        %v1379 = vrcp.pop %v1348
        %v1380 = vmul.f32 %v1316, %v1379
        %v1381 = vsel %vm1317, %v1350, inf
        %v1382 = vsel %vm1318, %v1352, inf
        %v1383 = vsel %vm1319, %v1354, inf
        %v1384 = vsel %vm1320, %v1356, inf
        %v1385 = vsel %vm1321, %v1358, inf
        %v1386 = vsel %vm1322, %v1360, inf
        %v1387 = vsel %vm1323, %v1362, inf
        %v1388 = vsel %vm1324, %v1364, inf
        %v1389 = vsel %vm1325, %v1366, inf
        %v1390 = vsel %vm1326, %v1368, inf
        %v1391 = vsel %vm1327, %v1370, inf
        %v1392 = vsel %vm1328, %v1372, inf
        %v1393 = vsel %vm1329, %v1374, inf
        %v1394 = vsel %vm1330, %v1376, inf
        %v1395 = vsel %vm1331, %v1378, inf
        %v1396 = vsel %vm1332, %v1380, inf
        %s1397 = sld [smem:[#allocation3]]
        %s1398 = sld [smem:[#allocation3 + $0x1]]
        %v1399 = vstv %s1397
        %v1400 = vmax.f32 %v1399, %v1381
        %v1401 = vmax.f32 %v1399, %v1382
        %v1402 = vmax.f32 %v1399, %v1383
        %v1403 = vmax.f32 %v1399, %v1384
        %v1404 = vmax.f32 %v1399, %v1385
        %v1405 = vmax.f32 %v1399, %v1386
        %v1406 = vmax.f32 %v1399, %v1387
        %v1407 = vmax.f32 %v1399, %v1388
        %v1408 = vmax.f32 %v1399, %v1389
        %v1409 = vmax.f32 %v1399, %v1390
        %v1410 = vmax.f32 %v1399, %v1391
        %v1411 = vmax.f32 %v1399, %v1392
        %v1412 = vmax.f32 %v1399, %v1393
        %v1413 = vmax.f32 %v1399, %v1394
        %v1414 = vmax.f32 %v1399, %v1395
        %v1415 = vmax.f32 %v1399, %v1396
        %v1416 = vstv %s1398
        %v1417 = vmin.f32 %v1416, %v1400
        %v1418 = vmin.f32 %v1416, %v1401
        %v1419 = vmin.f32 %v1416, %v1402
        %v1420 = vmin.f32 %v1416, %v1403
        %v1421 = vmin.f32 %v1416, %v1404
        %v1422 = vmin.f32 %v1416, %v1405
        %v1423 = vmin.f32 %v1416, %v1406
        %v1424 = vmin.f32 %v1416, %v1407
        %v1425 = vmin.f32 %v1416, %v1408
        %v1426 = vmin.f32 %v1416, %v1409
        %v1427 = vmin.f32 %v1416, %v1410
        %v1428 = vmin.f32 %v1416, %v1411
        %v1429 = vmin.f32 %v1416, %v1412
        %v1430 = vmin.f32 %v1416, %v1413
        %v1431 = vmin.f32 %v1416, %v1414
        %v1432 = vmin.f32 %v1416, %v1415
        %v1433 = vmul.f32 %v1417, 2.0
        %v1434 = vmul.f32 %v1418, 2.0
        %v1435 = vmul.f32 %v1419, 2.0
        %v1436 = vmul.f32 %v1420, 2.0
        %v1437 = vmul.f32 %v1421, 2.0
        %v1438 = vmul.f32 %v1422, 2.0
        %v1439 = vmul.f32 %v1423, 2.0
        %v1440 = vmul.f32 %v1424, 2.0
        %v1441 = vmul.f32 %v1425, 2.0
        %v1442 = vmul.f32 %v1426, 2.0
        %v1443 = vmul.f32 %v1427, 2.0
        %v1444 = vmul.f32 %v1428, 2.0
        %v1445 = vmul.f32 %v1429, 2.0
        %v1446 = vmul.f32 %v1430, 2.0
        %v1447 = vmul.f32 %v1431, 2.0
        %v1448 = vmul.f32 %v1432, 2.0
        %v1449 = vsub.f32 %v1433, 1.0
        %v1450 = vsub.f32 %v1434, 1.0
        %v1451 = vsub.f32 %v1435, 1.0
        %v1452 = vsub.f32 %v1436, 1.0
        %v1453 = vsub.f32 %v1437, 1.0
        %v1454 = vsub.f32 %v1438, 1.0
        %v1455 = vsub.f32 %v1439, 1.0
        %v1456 = vsub.f32 %v1440, 1.0
        %v1457 = vsub.f32 %v1441, 1.0
        %v1458 = vsub.f32 %v1442, 1.0
        %v1459 = vsub.f32 %v1443, 1.0
        %v1460 = vsub.f32 %v1444, 1.0
        %v1461 = vsub.f32 %v1445, 1.0
        %v1462 = vsub.f32 %v1446, 1.0
        %v1463 = vsub.f32 %v1447, 1.0
        %v1464 = vsub.f32 %v1448, 1.0
        %vm1465 = vcmask 7168
        %1466 = vst.msk [vmem:[%s249] sm:$0xff] %vm1465, %v1449
        %1467 = vst.msk [vmem:[%s249 + $0x8] sm:$0xff] %vm1465, %v1450
        %1468 = vst.msk [vmem:[%s249 + $0x10] sm:$0xff] %vm1465, %v1451
        %1469 = vst.msk [vmem:[%s249 + $0x18] sm:$0xff] %vm1465, %v1452
        %1470 = vst.msk [vmem:[%s249 + $0x20] sm:$0xff] %vm1465, %v1453
        %1471 = vst.msk [vmem:[%s249 + $0x28] sm:$0xff] %vm1465, %v1454
        %1472 = vst.msk [vmem:[%s249 + $0x30] sm:$0xff] %vm1465, %v1455
        %1473 = vst.msk [vmem:[%s249 + $0x38] sm:$0xff] %vm1465, %v1456
        %1474 = vst.msk [vmem:[%s249 + $0x40] sm:$0xff] %vm1465, %v1457
        %1475 = vst.msk [vmem:[%s249 + $0x48] sm:$0xff] %vm1465, %v1458
        %1476 = vst.msk [vmem:[%s249 + $0x50] sm:$0xff] %vm1465, %v1459
        %1477 = vst.msk [vmem:[%s249 + $0x58] sm:$0xff] %vm1465, %v1460
        %1478 = vst.msk [vmem:[%s249 + $0x60] sm:$0xff] %vm1465, %v1461
        %1479 = vst.msk [vmem:[%s249 + $0x68] sm:$0xff] %vm1465, %v1462
        %1480 = vst.msk [vmem:[%s249 + $0x70] sm:$0xff] %vm1465, %v1463
        %1481 = vst.msk [vmem:[%s249 + $0x78] sm:$0xff] %vm1465, %v1464
        %s1482 = sand.u32 %s89, 1
        %s1483 = scalar_lea.sflag [#allocation6], %s1482
        %s1484 = sand.u32 %s89, 1
        %s1485 = smul.addr %s1484, 128
        %s1486 = scalar_lea.vmem [#allocation9], %s1485
        %s1487 = smul.u32 16, %s29
        %p1488 = scmp.lt.s32.totalorder %s1487, 31
        %s1489 = scalar_select %p1488, %s1487, 31
        %s1490 = smul.addr %s1489, 8
        %s1491 = scalar_lea.vmem %s4, %s1490
        // Predicated region
        $region37: #{tpu_custom_call.1} parent=27 // pred_check
          %p1492 = pneg %p99
        $region38: #{tpu_custom_call.1} parent=27 // pred_check_branch
          %1494 = sbr.rel (%p1492) target = $region40
        $region39: #{tpu_custom_call.1} parent=27 // pred_region
          %s1495 = smul.u32 16, %s29
          %s1497 = ssub.s32 2048, 2048
          %1498 = vsyncadd %s1483, %s1497
          %s1499 = smul.addr %s1495, 128
          %s1500 = scalar_lea.hbm %s3, %s1499
          %s1501 = sshll.u32 %s1486, 4
          %s1502 = int_to_ptr.vmem [resolvable:$true] %s1501
          %1507 = dma.vmem_to_hbm [thread:$0]  %s1502, 2048, %s1500, %s1483, 128, 128, 8
        $region40: #{tpu_custom_call.1} parent=27 // pred_fallthru
          _
        // Predicated region
        $region41: #{tpu_custom_call.1} parent=27 // pred_check
          %p1508 = pneg %p125
        $region42: #{tpu_custom_call.1} parent=27 // pred_check_branch
          %1510 = sbr.rel (%p1508) target = $region44
        $region43: #{tpu_custom_call.1} parent=27 // pred_region
          %s1511 = smul.u32 16, %s29
        $region44: #{tpu_custom_call.1} parent=27 // pred_fallthru
          _
      $region28: #{tpu_custom_call.1} parent=5 // pred_fallthru
        _
      %p1512 = scmp.le.s32.totalorder 2, %s24
      // Predicated region
      $region45: #{tpu_custom_call.1} parent=5 // pred_check
        %p1513 = pneg %p1512
      $region46: #{tpu_custom_call.1} parent=5 // pred_check_branch
        %1515 = sbr.rel (%p1513) target = $region48
      $region47: #{tpu_custom_call.1} parent=5 // pred_region
        %s1516 = ssub.s32 %s24, 2
        // Predicated region
        $region49: #{tpu_custom_call.1} parent=47 // pred_check
          %p1517 = pneg %p105
        $region50: #{tpu_custom_call.1} parent=47 // pred_check_branch
          %1519 = sbr.rel (%p1517) target = $region52
        $region51: #{tpu_custom_call.1} parent=47 // pred_region
          %s1520 = sand.u32 %s90, 1
          %s1521 = scalar_lea.sflag [#allocation6], %s1520
          %s1522 = sand.u32 %s90, 1
          %s1523 = smul.addr %s1522, 128
          %s1524 = scalar_lea.vmem [#allocation9], %s1523
          %1525 = dma.done %s1521, 2048
        $region52: #{tpu_custom_call.1} parent=47 // pred_fallthru
          _
        // Predicated region
        $region53: #{tpu_custom_call.1} parent=47 // pred_check
          %p1526 = pneg %p131
        $region54: #{tpu_custom_call.1} parent=47 // pred_check_branch
          %1528 = sbr.rel (%p1526) target = $region56
        $region55: #{tpu_custom_call.1} parent=47 // pred_region
          %s1529 = smul.u32 16, %s30
          %p1530 = scmp.lt.s32.totalorder %s1529, 31
          %s1531 = scalar_select %p1530, %s1529, 31
          %s1532 = smul.addr %s1531, 8
          %s1533 = scalar_lea.vmem %s4, %s1532
        $region56: #{tpu_custom_call.1} parent=47 // pred_fallthru
          _
      $region48: #{tpu_custom_call.1} parent=5 // pred_fallthru
        _
    $region6: #{tpu_custom_call.1} parent=1 // loop_footer
      %s28 = sadd.s32 1, %s24
    $region7: #{tpu_custom_call.1} parent=1 // loop_footer_branch
      %23 = sbr.rel target = $region3
    $region8: #{tpu_custom_call.1} parent=1 // loop_exit
      _
    %1534 = vsyncpa [#allocation5], 1
    %s1535 = scalar_lea.sflag [#allocation5], 1
    %1536 = vsyncpa %s1535, 1
    %1537 = vsyncpa [#allocation8], 1
    %s1538 = scalar_lea.sflag [#allocation8], 1
    %1539 = vsyncpa %s1538, 1
    %1540 = vsyncpa [#allocation6], 1
    %s1541 = scalar_lea.sflag [#allocation6], 1
    %1542 = vsyncpa %s1541, 1

</llo_original>
